<compile_context>
chip_gen: v5e
topology: v5e:2x2
jax: 0.10.0
libtpu: 0.0.40
codegen_flags: <defaults>
</compile_context>

<pallas_src>
import functools

import jax
import jax.numpy as jnp
from jax.experimental import pallas as pl
from jax.experimental.pallas import tpu as pltpu


_XDIM = 20     # input feature width (x_dims[0])
_EMB = 20      # x embedding width (x_dims[-1])
_MAX_TILE = 4096  # keeps live VMEM (~1.7 KB/row) well inside v5e's 16 MiB scoped default


def _round_up(n, m):
    return (n + m - 1) // m * m


# ----------------------------- Pallas kernel -------------------------------

def _deep_causal_kernel(
    x_ref, t_ref,
    w1, b1, w2, b2, w3, b3,          # shared x_layers MLP  [20, 80, 160, 20]
    wy_a, by_a,                      # fused head layer 1   (20, 80)  = [wy01 | wy11]
    wy_b, by_b,                      # fused head layer 2   (80, 40)  block-diag(wy02, wy12)
    wo_rows, bo,                     # output heads as rows (2, 40) f32 + (1, 2) f32
    x_emb_ref, data_ref,             # outputs: (tm, 20) and (tm, 1)
    *, mm_dtype,
):
    f32 = jnp.float32

    def linear(h, w_r, b_r):
        # MXU matmul in mm_dtype with f32 accumulation; bias-add / ReLU stay in f32.
        return jnp.dot(h.astype(mm_dtype), w_r[...],
                       preferred_element_type=f32) + b_r[...]

    def relu(h):
        return jnp.maximum(h, 0.0)

    x = x_ref[...].astype(f32)

    # ---- shared representation MLP (ReLU after every Linear, incl. the last) ----
    h = relu(linear(x, w1, b1))
    h = relu(linear(h, w2, b2))
    x_emb = relu(linear(h, w3, b3))                        # (tm, 20) f32

    # ---- both treatment heads fused into wide / block-diagonal matmuls ----
    y = relu(linear(x_emb, wy_a, by_a))                    # (tm, 80): [head0 | head1]
    y = relu(linear(y, wy_b, by_b))                        # (tm, 40): [head0 | head1]

    # ---- output layer + SplitStreams/GatherStreams fused on the VPU ----
    # Instead of a nearly-empty (40, 2) MXU pass followed by a select, pick the
    # per-row output weight vector by treatment id and lane-reduce (f32 math).
    t = t_ref[...]                                         # (tm, 1) int32, t in {0, 1}
    is0 = (t == 0)
    wo_v = wo_rows[...]                                    # (2, 40) f32
    bo_v = bo[...]                                         # (1, 2)  f32
    w_sel = jnp.where(is0, wo_v[0:1, :], wo_v[1:2, :])     # (tm, 40)
    b_sel = jnp.where(is0, bo_v[:, 0:1], bo_v[:, 1:2])     # (tm, 1)
    data = jnp.sum(y * w_sel, axis=1, keepdims=True) + b_sel

    x_emb_ref[...] = x_emb.astype(x_emb_ref.dtype)
    data_ref[...] = data.astype(data_ref.dtype)


# ------------------------- fused-weight preparation -------------------------

def fuse_params(p, mm_dtype=jnp.bfloat16):
    """Build the fused/pre-cast weight tuple once; reuse it for every forward call."""
    # Guard the block placement against silent x_dims / y_dims changes.
    assert p["w1"].shape == (20, 80) and p["w2"].shape == (80, 160) and p["w3"].shape == (160, 20)
    assert p["wy01"].shape == (20, 40) and p["wy11"].shape == (20, 40)
    assert p["wy02"].shape == (40, 20) and p["wy12"].shape == (40, 20)
    assert p["wo0"].shape == (20, 1) and p["wo1"].shape == (20, 1)

    wy_a = jnp.concatenate([p["wy01"], p["wy11"]], axis=1)                    # (20, 80)
    by_a = jnp.concatenate([p["by01"], p["by11"]], axis=1)                    # (1, 80)
    wy_b = jnp.zeros((80, 40), jnp.float32)
    wy_b = wy_b.at[:40, :20].set(p["wy02"]).at[40:, 20:].set(p["wy12"])       # block-diag
    by_b = jnp.concatenate([p["by02"], p["by12"]], axis=1)                    # (1, 40)

    # Output heads as two 40-wide rows (kept f32; consumed on the VPU, not the MXU):
    #   row 0 = [wo0^T | 0...], row 1 = [0... | wo1^T]  -> data = sum(y * row_t) + bo_t
    wo_rows = jnp.zeros((2, 40), jnp.float32)
    wo_rows = wo_rows.at[0, :20].set(p["wo0"][:, 0]).at[1, 20:].set(p["wo1"][:, 0])
    bo = jnp.concatenate([p["bo0"], p["bo1"]], axis=1).astype(jnp.float32)    # (1, 2)

    cast_w = lambda w: w.astype(mm_dtype)
    cast_b = lambda b: b.astype(jnp.float32)
    return (
        cast_w(p["w1"]), cast_b(p["b1"]),
        cast_w(p["w2"]), cast_b(p["b2"]),
        cast_w(p["w3"]), cast_b(p["b3"]),
        cast_w(wy_a), cast_b(by_a),
        cast_w(wy_b), cast_b(by_b),
        wo_rows, bo,
    )


# ------------------------------- wrapper ------------------------------------

def deep_causal_forward(x, treatment, fused, *, tile_m=_MAX_TILE, mm_dtype=jnp.bfloat16):
    """DeepCausalModel forward (training branch).

    x: (N, 20) f32, treatment: (N,) int in {0, 1}.
    `fused` is the output of fuse_params(params, mm_dtype) — build it once and reuse.
    Returns (data (N,1), x_emb (N,20), t_outputs (N,1)) like the PyTorch module.
    mm_dtype=bfloat16 (default) is the MXU-native fast path with f32 accumulation;
    use mm_dtype=jnp.float32 if bit-exact parity with the PyTorch f32 module is required.
    """
    N, D = x.shape
    assert D == _XDIM

    align = 16 if mm_dtype == jnp.bfloat16 else 8
    # Tile selection:
    #   * cap at 4096 rows so intermediates + double-buffers fit v5e's default scoped VMEM,
    #   * cap at round_up(cdiv(N, 4)) so v7x's two TensorCores both get grid steps,
    #   * keep it 8/16-aligned; the ragged tail is a natural partial last block.
    tm = min(int(tile_m), _MAX_TILE)
    tm = min(tm, _round_up(pl.cdiv(N, 4), align))
    tm = max(tm, align)
    grid = pl.cdiv(N, tm)

    t2 = treatment.astype(jnp.int32).reshape(N, 1)

    x_spec = pl.BlockSpec((tm, D), lambda i: (i, 0))
    t_spec = pl.BlockSpec((tm, 1), lambda i: (i, 0))
    # whole-array, constant-index specs: copied once, stay resident in VMEM (~50-90 KB)
    w_specs = [pl.BlockSpec(w.shape, lambda i: (0, 0)) for w in fused]
    out_specs = (
        pl.BlockSpec((tm, _EMB), lambda i: (i, 0)),   # x_emb
        pl.BlockSpec((tm, 1), lambda i: (i, 0)),      # data
    )
    out_shape = (
        jax.ShapeDtypeStruct((N, _EMB), jnp.float32),
        jax.ShapeDtypeStruct((N, 1), jnp.float32),
    )

    x_emb, data = pl.pallas_call(
        functools.partial(_deep_causal_kernel, mm_dtype=mm_dtype),
        out_shape=out_shape,
        grid=(grid,),
        in_specs=[x_spec, t_spec] + w_specs,
        out_specs=out_specs,
        compiler_params=pltpu.CompilerParams(
            dimension_semantics=("parallel",),   # shard batch tiles across TCs on v7x
        ),
    )(x, t2, *fused)

    # softmax over a size-1 dim is identically 1.0 -> the wt/bt matmul, exp and reduce are elided
    t_outputs = jnp.ones((N, 1), jnp.float32)
    return data, x_emb, t_outputs


# ------------------------- deterministic init -------------------------------

def _init_linear(key, fan_in, fan_out):
    kw, kb = jax.random.split(key)
    bound = 1.0 / jnp.sqrt(fan_in)
    w = jax.random.uniform(kw, (fan_in, fan_out), jnp.float32, -bound, bound)
    b = jax.random.uniform(kb, (1, fan_out), jnp.float32, -bound, bound)
    return w, b


def make_params(key):
    keys = jax.random.split(key, 11)
    p = {}
    p["w1"], p["b1"] = _init_linear(keys[0], 20, 80)
    p["w2"], p["b2"] = _init_linear(keys[1], 80, 160)
    p["w3"], p["b3"] = _init_linear(keys[2], 160, 20)
    p["wy01"], p["by01"] = _init_linear(keys[3], 20, 40)
    p["wy02"], p["by02"] = _init_linear(keys[4], 40, 20)
    p["wy11"], p["by11"] = _init_linear(keys[5], 20, 40)
    p["wy12"], p["by12"] = _init_linear(keys[6], 40, 20)
    p["wo0"], p["bo0"] = _init_linear(keys[7], 20, 1)
    p["wo1"], p["bo1"] = _init_linear(keys[8], 20, 1)
    p["wt"], p["bt"] = _init_linear(keys[9], 20, 1)
    return p


# ------------------------- pure-JAX reference --------------------------------

def reference_forward(x, treatment, p):
    relu = lambda h: jnp.maximum(h, 0.0)
    lin = lambda h, w, b: h @ w + b
    x_emb = relu(lin(relu(lin(relu(lin(x, p["w1"], p["b1"])), p["w2"], p["b2"])),
                     p["w3"], p["b3"]))
    y0 = relu(lin(relu(lin(x_emb, p["wy01"], p["by01"])), p["wy02"], p["by02"]))
    o0 = lin(y0, p["wo0"], p["bo0"])
    y1 = relu(lin(relu(lin(x_emb, p["wy11"], p["by11"])), p["wy12"], p["by12"]))
    o1 = lin(y1, p["wo1"], p["bo1"])
    data = jnp.where(treatment.reshape(-1, 1) == 0, o0, o1)
    t_out = jax.nn.softmax(lin(x_emb, p["wt"], p["bt"]), axis=1)
    return data, x_emb, t_out


# --------------------------------- main --------------------------------------

if __name__ == "__main__":
    key = jax.random.PRNGKey(0)
    kx, kt, kp = jax.random.split(key, 3)

    N, D = 40, 20
    x = jax.random.normal(kx, (N, D), jnp.float32)
    treatment = jax.random.randint(kt, (N,), 0, 2, jnp.int32)
    params = make_params(kp)

    rd, re_, rt = reference_forward(x, treatment, params)

    # --- f32 path: bit-level parity with the PyTorch module; multi-step ragged grid ---
    fused_f32 = fuse_params(params, mm_dtype=jnp.float32)
    data, x_emb, t_out = deep_causal_forward(x, treatment, fused_f32,
                                             mm_dtype=jnp.float32)
    jax.block_until_ready((data, x_emb, t_out))
    assert jnp.allclose(data, rd, atol=1e-5, rtol=1e-5)
    assert jnp.allclose(x_emb, re_, atol=1e-5, rtol=1e-5)
    assert jnp.allclose(t_out, rt, atol=1e-5, rtol=1e-5)

    # --- default bf16 fast path: MXU-native inputs, f32 accumulation (~1e-3 rel error) ---
    fused_bf16 = fuse_params(params)              # hoisted/cached fused weights
    data2, x_emb2, t_out2 = deep_causal_forward(x, treatment, fused_bf16)
    jax.block_until_ready((data2, x_emb2, t_out2))
    assert jnp.allclose(data2, rd, atol=5e-2, rtol=5e-2)
    assert jnp.allclose(x_emb2, re_, atol=5e-2, rtol=5e-2)
    assert jnp.allclose(t_out2, rt, atol=1e-6, rtol=1e-6)

    print("KERNEL_OK")
</pallas_src>

<mosaic_0001>
module attributes {stable_mosaic.version = 11 : i64} {
  func.func @_deep_causal_kernel(%arg0: i32, %arg1: memref<16x20xf32, #tpu.memory_space<vmem>>, %arg2: memref<16x1xi32, #tpu.memory_space<vmem>>, %arg3: memref<20x80xf32, #tpu.memory_space<vmem>>, %arg4: memref<1x80xf32, #tpu.memory_space<vmem>>, %arg5: memref<80x160xf32, #tpu.memory_space<vmem>>, %arg6: memref<1x160xf32, #tpu.memory_space<vmem>>, %arg7: memref<160x20xf32, #tpu.memory_space<vmem>>, %arg8: memref<1x20xf32, #tpu.memory_space<vmem>>, %arg9: memref<20x80xf32, #tpu.memory_space<vmem>>, %arg10: memref<1x80xf32, #tpu.memory_space<vmem>>, %arg11: memref<80x40xf32, #tpu.memory_space<vmem>>, %arg12: memref<1x40xf32, #tpu.memory_space<vmem>>, %arg13: memref<2x40xf32, #tpu.memory_space<vmem>>, %arg14: memref<1x2xf32, #tpu.memory_space<vmem>>, %arg15: memref<16x20xf32, #tpu.memory_space<vmem>>, %arg16: memref<16x1xf32, #tpu.memory_space<vmem>>) attributes {dimension_semantics = [#tpu.dimension_semantics<parallel>], iteration_bounds = array<i64: 3>, scalar_prefetch = 0 : i64, scratch_operands = 0 : i64, tpu.core_type = #tpu.core_type<tc>, window_params = [{transform_indices = @transform_0, window_bounds = array<i64: 16, 20>}, {transform_indices = @transform_1, window_bounds = array<i64: 16, 1>}, {pipeline_mode = #tpu.pipeline_mode<synchronous>, transform_indices = @transform_2, window_bounds = array<i64: 20, 80>}, {pipeline_mode = #tpu.pipeline_mode<synchronous>, transform_indices = @transform_3, window_bounds = array<i64: 1, 80>}, {pipeline_mode = #tpu.pipeline_mode<synchronous>, transform_indices = @transform_4, window_bounds = array<i64: 80, 160>}, {pipeline_mode = #tpu.pipeline_mode<synchronous>, transform_indices = @transform_5, window_bounds = array<i64: 1, 160>}, {pipeline_mode = #tpu.pipeline_mode<synchronous>, transform_indices = @transform_6, window_bounds = array<i64: 160, 20>}, {pipeline_mode = #tpu.pipeline_mode<synchronous>, transform_indices = @transform_7, window_bounds = array<i64: 1, 20>}, {pipeline_mode = #tpu.pipeline_mode<synchronous>, transform_indices = @transform_8, window_bounds = array<i64: 20, 80>}, {pipeline_mode = #tpu.pipeline_mode<synchronous>, transform_indices = @transform_9, window_bounds = array<i64: 1, 80>}, {pipeline_mode = #tpu.pipeline_mode<synchronous>, transform_indices = @transform_10, window_bounds = array<i64: 80, 40>}, {pipeline_mode = #tpu.pipeline_mode<synchronous>, transform_indices = @transform_11, window_bounds = array<i64: 1, 40>}, {pipeline_mode = #tpu.pipeline_mode<synchronous>, transform_indices = @transform_12, window_bounds = array<i64: 2, 40>}, {pipeline_mode = #tpu.pipeline_mode<synchronous>, transform_indices = @transform_13, window_bounds = array<i64: 1, 2>}, {transform_indices = @transform_14, window_bounds = array<i64: 16, 20>}, {transform_indices = @transform_15, window_bounds = array<i64: 16, 1>}]} {
    %c0 = arith.constant 0 : index
    %c0_0 = arith.constant 0 : index
    %0 = vector.load %arg1[%c0, %c0_0] : memref<16x20xf32, #tpu.memory_space<vmem>>, vector<16x20xf32>
    %c0_1 = arith.constant 0 : index
    %c0_2 = arith.constant 0 : index
    %1 = vector.load %arg3[%c0_1, %c0_2] : memref<20x80xf32, #tpu.memory_space<vmem>>, vector<20x80xf32>
    %cst = arith.constant dense<0.000000e+00> : vector<16x80xf32>
    %2 = tpu.matmul %0, %1, %cst {dimension_numbers = #tpu.dot_dimension_numbers<[1], [0], [0], [1], [0, 0, 1, 1], [], []>} : vector<16x20xf32>, vector<20x80xf32>, vector<16x80xf32> -> vector<16x80xf32>
    %c0_3 = arith.constant 0 : index
    %c0_4 = arith.constant 0 : index
    %3 = vector.load %arg4[%c0_3, %c0_4] : memref<1x80xf32, #tpu.memory_space<vmem>>, vector<1x80xf32>
    %4 = vector.broadcast %3 : vector<1x80xf32> to vector<16x80xf32>
    %5 = arith.addf %2, %4 : vector<16x80xf32>
    %cst_5 = arith.constant 0.000000e+00 : f32
    %6 = vector.broadcast %cst_5 : f32 to vector<16x80xf32>
    %7 = arith.maximumf %5, %6 : vector<16x80xf32>
    %c0_6 = arith.constant 0 : index
    %c0_7 = arith.constant 0 : index
    %8 = vector.load %arg5[%c0_6, %c0_7] : memref<80x160xf32, #tpu.memory_space<vmem>>, vector<80x160xf32>
    %cst_8 = arith.constant dense<0.000000e+00> : vector<16x160xf32>
    %9 = tpu.matmul %7, %8, %cst_8 {dimension_numbers = #tpu.dot_dimension_numbers<[1], [0], [0], [1], [0, 0, 1, 1], [], []>} : vector<16x80xf32>, vector<80x160xf32>, vector<16x160xf32> -> vector<16x160xf32>
    %c0_9 = arith.constant 0 : index
    %c0_10 = arith.constant 0 : index
    %10 = vector.load %arg6[%c0_9, %c0_10] : memref<1x160xf32, #tpu.memory_space<vmem>>, vector<1x160xf32>
    %11 = vector.broadcast %10 : vector<1x160xf32> to vector<16x160xf32>
    %12 = arith.addf %9, %11 : vector<16x160xf32>
    %cst_11 = arith.constant 0.000000e+00 : f32
    %13 = vector.broadcast %cst_11 : f32 to vector<16x160xf32>
    %14 = arith.maximumf %12, %13 : vector<16x160xf32>
    %c0_12 = arith.constant 0 : index
    %c0_13 = arith.constant 0 : index
    %15 = vector.load %arg7[%c0_12, %c0_13] : memref<160x20xf32, #tpu.memory_space<vmem>>, vector<160x20xf32>
    %cst_14 = arith.constant dense<0.000000e+00> : vector<16x20xf32>
    %16 = tpu.matmul %14, %15, %cst_14 {dimension_numbers = #tpu.dot_dimension_numbers<[1], [0], [0], [1], [0, 0, 1, 1], [], []>} : vector<16x160xf32>, vector<160x20xf32>, vector<16x20xf32> -> vector<16x20xf32>
    %c0_15 = arith.constant 0 : index
    %c0_16 = arith.constant 0 : index
    %17 = vector.load %arg8[%c0_15, %c0_16] : memref<1x20xf32, #tpu.memory_space<vmem>>, vector<1x20xf32>
    %18 = vector.broadcast %17 : vector<1x20xf32> to vector<16x20xf32>
    %19 = arith.addf %16, %18 : vector<16x20xf32>
    %cst_17 = arith.constant 0.000000e+00 : f32
    %20 = vector.broadcast %cst_17 : f32 to vector<16x20xf32>
    %21 = arith.maximumf %19, %20 : vector<16x20xf32>
    %c0_18 = arith.constant 0 : index
    %c0_19 = arith.constant 0 : index
    %22 = vector.load %arg9[%c0_18, %c0_19] : memref<20x80xf32, #tpu.memory_space<vmem>>, vector<20x80xf32>
    %cst_20 = arith.constant dense<0.000000e+00> : vector<16x80xf32>
    %23 = tpu.matmul %21, %22, %cst_20 {dimension_numbers = #tpu.dot_dimension_numbers<[1], [0], [0], [1], [0, 0, 1, 1], [], []>} : vector<16x20xf32>, vector<20x80xf32>, vector<16x80xf32> -> vector<16x80xf32>
    %c0_21 = arith.constant 0 : index
    %c0_22 = arith.constant 0 : index
    %24 = vector.load %arg10[%c0_21, %c0_22] : memref<1x80xf32, #tpu.memory_space<vmem>>, vector<1x80xf32>
    %25 = vector.broadcast %24 : vector<1x80xf32> to vector<16x80xf32>
    %26 = arith.addf %23, %25 : vector<16x80xf32>
    %cst_23 = arith.constant 0.000000e+00 : f32
    %27 = vector.broadcast %cst_23 : f32 to vector<16x80xf32>
    %28 = arith.maximumf %26, %27 : vector<16x80xf32>
    %c0_24 = arith.constant 0 : index
    %c0_25 = arith.constant 0 : index
    %29 = vector.load %arg11[%c0_24, %c0_25] : memref<80x40xf32, #tpu.memory_space<vmem>>, vector<80x40xf32>
    %cst_26 = arith.constant dense<0.000000e+00> : vector<16x40xf32>
    %30 = tpu.matmul %28, %29, %cst_26 {dimension_numbers = #tpu.dot_dimension_numbers<[1], [0], [0], [1], [0, 0, 1, 1], [], []>} : vector<16x80xf32>, vector<80x40xf32>, vector<16x40xf32> -> vector<16x40xf32>
    %c0_27 = arith.constant 0 : index
    %c0_28 = arith.constant 0 : index
    %31 = vector.load %arg12[%c0_27, %c0_28] : memref<1x40xf32, #tpu.memory_space<vmem>>, vector<1x40xf32>
    %32 = vector.broadcast %31 : vector<1x40xf32> to vector<16x40xf32>
    %33 = arith.addf %30, %32 : vector<16x40xf32>
    %cst_29 = arith.constant 0.000000e+00 : f32
    %34 = vector.broadcast %cst_29 : f32 to vector<16x40xf32>
    %35 = arith.maximumf %33, %34 : vector<16x40xf32>
    %c0_30 = arith.constant 0 : index
    %c0_31 = arith.constant 0 : index
    %36 = vector.load %arg2[%c0_30, %c0_31] : memref<16x1xi32, #tpu.memory_space<vmem>>, vector<16x1xi32>
    %c0_i32 = arith.constant 0 : i32
    %37 = vector.broadcast %c0_i32 : i32 to vector<16x1xi32>
    %38 = arith.cmpi eq, %36, %37 : vector<16x1xi32>
    %c0_32 = arith.constant 0 : index
    %c0_33 = arith.constant 0 : index
    %39 = vector.load %arg13[%c0_32, %c0_33] : memref<2x40xf32, #tpu.memory_space<vmem>>, vector<2x40xf32>
    %c0_34 = arith.constant 0 : index
    %c0_35 = arith.constant 0 : index
    %40 = vector.load %arg14[%c0_34, %c0_35] : memref<1x2xf32, #tpu.memory_space<vmem>>, vector<1x2xf32>
    %41 = vector.extract_strided_slice %39 {offsets = [0, 0], sizes = [1, 40], strides = [1, 1]} : vector<2x40xf32> to vector<1x40xf32>
    %42 = vector.extract_strided_slice %39 {offsets = [1, 0], sizes = [1, 40], strides = [1, 1]} : vector<2x40xf32> to vector<1x40xf32>
    %43 = vector.shape_cast %38 : vector<16x1xi1> to vector<16x1xi1>
    %44 = vector.broadcast %43 : vector<16x1xi1> to vector<16x40xi1>
    %45 = vector.shape_cast %41 : vector<1x40xf32> to vector<1x40xf32>
    %46 = vector.broadcast %45 : vector<1x40xf32> to vector<16x40xf32>
    %47 = vector.shape_cast %42 : vector<1x40xf32> to vector<1x40xf32>
    %48 = vector.broadcast %47 : vector<1x40xf32> to vector<16x40xf32>
    %49 = arith.select %44, %46, %48 : vector<16x40xi1>, vector<16x40xf32>
    %50 = vector.extract_strided_slice %40 {offsets = [0, 0], sizes = [1, 1], strides = [1, 1]} : vector<1x2xf32> to vector<1x1xf32>
    %51 = vector.extract_strided_slice %40 {offsets = [0, 1], sizes = [1, 1], strides = [1, 1]} : vector<1x2xf32> to vector<1x1xf32>
    %52 = vector.shape_cast %50 : vector<1x1xf32> to vector<1x1xf32>
    %53 = vector.broadcast %52 : vector<1x1xf32> to vector<16x1xf32>
    %54 = vector.shape_cast %51 : vector<1x1xf32> to vector<1x1xf32>
    %55 = vector.broadcast %54 : vector<1x1xf32> to vector<16x1xf32>
    %56 = arith.select %38, %53, %55 : vector<16x1xi1>, vector<16x1xf32>
    %57 = arith.mulf %35, %49 : vector<16x40xf32>
    %cst_36 = arith.constant dense<0.000000e+00> : vector<16xf32>
    %58 = vector.multi_reduction <add>, %57, %cst_36 [1] : vector<16x40xf32> to vector<16xf32>
    %59 = vector.shape_cast %58 : vector<16xf32> to vector<16x1xf32>
    %60 = arith.addf %59, %56 : vector<16x1xf32>
    %c0_37 = arith.constant 0 : index
    %c0_38 = arith.constant 0 : index
    %61 = vector.load %arg15[%c0_37, %c0_38] : memref<16x20xf32, #tpu.memory_space<vmem>>, vector<16x20xf32>
    tpu.vector_store %arg15[%c0_37, %c0_38], %21 {strides = array<i32>} : memref<16x20xf32, #tpu.memory_space<vmem>>, vector<16x20xf32>,
    %c0_39 = arith.constant 0 : index
    %c0_40 = arith.constant 0 : index
    %62 = vector.load %arg16[%c0_39, %c0_40] : memref<16x1xf32, #tpu.memory_space<vmem>>, vector<16x1xf32>
    tpu.vector_store %arg16[%c0_39, %c0_40], %60 {strides = array<i32>} : memref<16x1xf32, #tpu.memory_space<vmem>>, vector<16x1xf32>,
    return
  }
  func.func @transform_0(%arg0: i32) -> (i32, i32) {
    %c0_i32 = arith.constant 0 : i32
    %c0_i32_0 = arith.constant 0 : i32
    return %arg0, %c0_i32 : i32, i32
  }
  func.func @transform_1(%arg0: i32) -> (i32, i32) {
    %c0_i32 = arith.constant 0 : i32
    %c0_i32_0 = arith.constant 0 : i32
    return %arg0, %c0_i32 : i32, i32
  }
  func.func @transform_2(%arg0: i32) -> (i32, i32) {
    %c0_i32 = arith.constant 0 : i32
    %c0_i32_0 = arith.constant 0 : i32
    %c0_i32_1 = arith.constant 0 : i32
    return %c0_i32, %c0_i32_0 : i32, i32
  }
  func.func @transform_3(%arg0: i32) -> (i32, i32) {
    %c0_i32 = arith.constant 0 : i32
    %c0_i32_0 = arith.constant 0 : i32
    %c0_i32_1 = arith.constant 0 : i32
    return %c0_i32, %c0_i32_0 : i32, i32
  }
  func.func @transform_4(%arg0: i32) -> (i32, i32) {
    %c0_i32 = arith.constant 0 : i32
    %c0_i32_0 = arith.constant 0 : i32
    %c0_i32_1 = arith.constant 0 : i32
    return %c0_i32, %c0_i32_0 : i32, i32
  }
  func.func @transform_5(%arg0: i32) -> (i32, i32) {
    %c0_i32 = arith.constant 0 : i32
    %c0_i32_0 = arith.constant 0 : i32
    %c0_i32_1 = arith.constant 0 : i32
    return %c0_i32, %c0_i32_0 : i32, i32
  }
  func.func @transform_6(%arg0: i32) -> (i32, i32) {
    %c0_i32 = arith.constant 0 : i32
    %c0_i32_0 = arith.constant 0 : i32
    %c0_i32_1 = arith.constant 0 : i32
    return %c0_i32, %c0_i32_0 : i32, i32
  }
  func.func @transform_7(%arg0: i32) -> (i32, i32) {
    %c0_i32 = arith.constant 0 : i32
    %c0_i32_0 = arith.constant 0 : i32
    %c0_i32_1 = arith.constant 0 : i32
    return %c0_i32, %c0_i32_0 : i32, i32
  }
  func.func @transform_8(%arg0: i32) -> (i32, i32) {
    %c0_i32 = arith.constant 0 : i32
    %c0_i32_0 = arith.constant 0 : i32
    %c0_i32_1 = arith.constant 0 : i32
    return %c0_i32, %c0_i32_0 : i32, i32
  }
  func.func @transform_9(%arg0: i32) -> (i32, i32) {
    %c0_i32 = arith.constant 0 : i32
    %c0_i32_0 = arith.constant 0 : i32
    %c0_i32_1 = arith.constant 0 : i32
    return %c0_i32, %c0_i32_0 : i32, i32
  }
  func.func @transform_10(%arg0: i32) -> (i32, i32) {
    %c0_i32 = arith.constant 0 : i32
    %c0_i32_0 = arith.constant 0 : i32
    %c0_i32_1 = arith.constant 0 : i32
    return %c0_i32, %c0_i32_0 : i32, i32
  }
  func.func @transform_11(%arg0: i32) -> (i32, i32) {
    %c0_i32 = arith.constant 0 : i32
    %c0_i32_0 = arith.constant 0 : i32
    %c0_i32_1 = arith.constant 0 : i32
    return %c0_i32, %c0_i32_0 : i32, i32
  }
  func.func @transform_12(%arg0: i32) -> (i32, i32) {
    %c0_i32 = arith.constant 0 : i32
    %c0_i32_0 = arith.constant 0 : i32
    %c0_i32_1 = arith.constant 0 : i32
    return %c0_i32, %c0_i32_0 : i32, i32
  }
  func.func @transform_13(%arg0: i32) -> (i32, i32) {
    %c0_i32 = arith.constant 0 : i32
    %c0_i32_0 = arith.constant 0 : i32
    %c0_i32_1 = arith.constant 0 : i32
    return %c0_i32, %c0_i32_0 : i32, i32
  }
  func.func @transform_14(%arg0: i32) -> (i32, i32) {
    %c0_i32 = arith.constant 0 : i32
    %c0_i32_0 = arith.constant 0 : i32
    return %arg0, %c0_i32 : i32, i32
  }
  func.func @transform_15(%arg0: i32) -> (i32, i32) {
    %c0_i32 = arith.constant 0 : i32
    %c0_i32_0 = arith.constant 0 : i32
    return %arg0, %c0_i32 : i32, i32
  }
}

</mosaic_0001>

<llo_original>
// kernel: tpu_custom_call.1
$region0: #{tpu_custom_call.1}
  #allocation0 [shape = 'u32[]', space=smem, size = 0x4, offset = 0x4, fixed_abs, tag = 'smem constant byte address 0x4 - core index']
  #allocation1 [shape = 'u32[72,128]{1,0:T(1,128)}', space=vmem, size = 0x9000, scoped, tag = 'internal scratch']
  %s0 = inlined_call_operand.vmem [shape: f32[40,20], index: 0, kind: input, shape index: {}]
  %s1 = inlined_call_operand.vmem [shape: s32[40,1], index: 1, kind: input, shape index: {}]
  %s2 = inlined_call_operand.vmem [shape: f32[20,80], index: 2, kind: input, shape index: {}]
  %s3 = inlined_call_operand.vmem [shape: f32[1,80], index: 3, kind: input, shape index: {}]
  %s4 = inlined_call_operand.vmem [shape: f32[80,160], index: 4, kind: input, shape index: {}]
  %s5 = inlined_call_operand.vmem [shape: f32[1,160], index: 5, kind: input, shape index: {}]
  %s6 = inlined_call_operand.vmem [shape: f32[160,20], index: 6, kind: input, shape index: {}]
  %s7 = inlined_call_operand.vmem [shape: f32[1,20], index: 7, kind: input, shape index: {}]
  %s8 = inlined_call_operand.vmem [shape: f32[20,80], index: 8, kind: input, shape index: {}]
  %s9 = inlined_call_operand.vmem [shape: f32[1,80], index: 9, kind: input, shape index: {}]
  %s10 = inlined_call_operand.vmem [shape: f32[80,40], index: 10, kind: input, shape index: {}]
  %s11 = inlined_call_operand.vmem [shape: f32[1,40], index: 11, kind: input, shape index: {}]
  %s12 = inlined_call_operand.vmem [shape: f32[2,40], index: 12, kind: input, shape index: {}]
  %s13 = inlined_call_operand.vmem [shape: f32[1,2], index: 13, kind: input, shape index: {}]
  %s14 = inlined_call_operand.vmem [shape: f32[40,20], index: 14, kind: output, shape index: {0}]
  %s15 = inlined_call_operand.vmem [shape: f32[40,1], index: 15, kind: output, shape index: {1}]
  %16 = xla_tuple %s14, %s15
  %s17 = sld [smem:[#allocation0]]
  $region193: #{tpu_custom_call.1} parent=0
    _
  %s19 = ssub.s32 1, %s17
  %s20 = scalar_select 0, %s19, %s17
  $region1: #{tpu_custom_call.1} parent=0
    #allocation2 [shape = 'u8[16384]{0}', space=vmem, size = 0x4000, scoped, tag = 'output window, operand 0']
    #allocation3 [shape = 'u8[16384]{0}', space=vmem, size = 0x4000, scoped, tag = 'output window, operand 1']
    loop: start=0, step=1, limit=5
    $region2: #{tpu_custom_call.1} parent=1 // loop_pre_header
      _
    $region3: #{tpu_custom_call.1} parent=1 // loop_header
      %s22 = sphi 0, %s26
      %p23 = scmp.ge.s32.totalorder %s22, 5
      %s32 = sphi 0, %s34
      %s35 = sphi 0, %s32
      %s36 = sphi 0, %s35
      %s52 = sphi 0, %s36
      %s58 = sphi 0, %s60
      %s61 = sphi 0, %s58
      %s62 = sphi 0, %s61
      %s78 = sphi 0, %s62
      %s82 = sphi 0, %s82
      %s84 = sphi 0, %s82
      %s85 = sphi 0, %s84
      %s99 = sphi 0, %s85
      %s103 = sphi 0, %s103
      %s105 = sphi 0, %s103
      %s106 = sphi 0, %s105
      %s120 = sphi 0, %s106
      %s124 = sphi 0, %s124
      %s126 = sphi 0, %s124
      %s127 = sphi 0, %s126
      %s141 = sphi 0, %s127
      %s145 = sphi 0, %s145
      %s147 = sphi 0, %s145
      %s148 = sphi 0, %s147
      %s162 = sphi 0, %s148
      %s166 = sphi 0, %s166
      %s168 = sphi 0, %s166
      %s169 = sphi 0, %s168
      %s183 = sphi 0, %s169
      %s187 = sphi 0, %s187
      %s189 = sphi 0, %s187
      %s190 = sphi 0, %s189
      %s204 = sphi 0, %s190
      %s208 = sphi 0, %s208
      %s210 = sphi 0, %s208
      %s211 = sphi 0, %s210
      %s225 = sphi 0, %s211
      %s229 = sphi 0, %s229
      %s231 = sphi 0, %s229
      %s232 = sphi 0, %s231
      %s246 = sphi 0, %s232
      %s250 = sphi 0, %s250
      %s252 = sphi 0, %s250
      %s253 = sphi 0, %s252
      %s267 = sphi 0, %s253
      %s271 = sphi 0, %s271
      %s273 = sphi 0, %s271
      %s274 = sphi 0, %s273
      %s288 = sphi 0, %s274
      %s292 = sphi 0, %s292
      %s294 = sphi 0, %s292
      %s295 = sphi 0, %s294
      %s309 = sphi 0, %s295
      %s313 = sphi 0, %s313
      %s315 = sphi 0, %s313
      %s316 = sphi 0, %s315
      %s330 = sphi 0, %s316
      %s336 = sphi 0, %s338
      %s339 = sphi 0, %s336
      %s340 = sphi 0, %s339
      %s356 = sphi 0, %s340
      %s362 = sphi 0, %s364
      %s365 = sphi 0, %s362
      %s366 = sphi 0, %s365
      %s382 = sphi 0, %s366
    $region4: #{tpu_custom_call.1} parent=1 // loop_header_branch
      %25 = sbr.rel (%p23) target = $region8
    $region5: #{tpu_custom_call.1} parent=1 // loop_body
      %s27 = ssub.s32 %s22, 1
      %s28 = ssub.s32 %s22, 2
      %s29 = sadd.s32 %s22, 1
      %s30 = ssub.s32 %s22, %s29
      %p31 = scmp.eq.s32.totalorder %s30, 0
      %s33 = sadd.s32 %s32, 1
      %s34 = scalar_select %p31, %s32, %s33
      %p37 = pneg %p31
      %p38 = scmp.eq.s32.totalorder %s22, 2
      %p39 = por %p37, %p38
      %p40 = scmp.ne.s32.totalorder %s32, %s35
      %p41 = scmp.eq.s32.totalorder %s22, 0
      %p42 = por %p40, %p41
      %p43 = scmp.ne.s32.totalorder %s32, %s35
      %p44 = scmp.eq.s32.totalorder %s27, 2
      %p45 = por %p43, %p44
      %p46 = scmp.ne.s32.totalorder %s35, %s36
      %p47 = scmp.eq.s32.totalorder %s27, 0
      %p48 = por %p46, %p47
      %p49 = scmp.ne.s32.totalorder %s35, %s36
      %p50 = scmp.eq.s32.totalorder %s28, 2
      %p51 = por %p49, %p50
      %p53 = scmp.ne.s32.totalorder %s36, %s52
      %p54 = scmp.eq.s32.totalorder %s28, 0
      %p55 = por %p53, %p54
      %s56 = ssub.s32 %s22, %s29
      %p57 = scmp.eq.s32.totalorder %s56, 0
      %s59 = sadd.s32 %s58, 1
      %s60 = scalar_select %p57, %s58, %s59
      %p63 = pneg %p57
      %p64 = scmp.eq.s32.totalorder %s22, 2
      %p65 = por %p63, %p64
      %p66 = scmp.ne.s32.totalorder %s58, %s61
      %p67 = scmp.eq.s32.totalorder %s22, 0
      %p68 = por %p66, %p67
      %p69 = scmp.ne.s32.totalorder %s58, %s61
      %p70 = scmp.eq.s32.totalorder %s27, 2
      %p71 = por %p69, %p70
      %p72 = scmp.ne.s32.totalorder %s61, %s62
      %p73 = scmp.eq.s32.totalorder %s27, 0
      %p74 = por %p72, %p73
      %p75 = scmp.ne.s32.totalorder %s61, %s62
      %p76 = scmp.eq.s32.totalorder %s28, 2
      %p77 = por %p75, %p76
      %p79 = scmp.ne.s32.totalorder %s62, %s78
      %p80 = scmp.eq.s32.totalorder %s28, 0
      %p81 = por %p79, %p80
      %s83 = sadd.s32 %s82, 1
      %p86 = scmp.eq.s32.totalorder %s22, 2
      %p87 = scmp.ne.s32.totalorder %s82, %s84
      %p88 = scmp.eq.s32.totalorder %s22, 0
      %p89 = por %p87, %p88
      %p90 = scmp.ne.s32.totalorder %s82, %s84
      %p91 = scmp.eq.s32.totalorder %s27, 2
      %p92 = por %p90, %p91
      %p93 = scmp.ne.s32.totalorder %s84, %s85
      %p94 = scmp.eq.s32.totalorder %s27, 0
      %p95 = por %p93, %p94
      %p96 = scmp.ne.s32.totalorder %s84, %s85
      %p97 = scmp.eq.s32.totalorder %s28, 2
      %p98 = por %p96, %p97
      %p100 = scmp.ne.s32.totalorder %s85, %s99
      %p101 = scmp.eq.s32.totalorder %s28, 0
      %p102 = por %p100, %p101
      %s104 = sadd.s32 %s103, 1
      %p107 = scmp.eq.s32.totalorder %s22, 2
      %p108 = scmp.ne.s32.totalorder %s103, %s105
      %p109 = scmp.eq.s32.totalorder %s22, 0
      %p110 = por %p108, %p109
      %p111 = scmp.ne.s32.totalorder %s103, %s105
      %p112 = scmp.eq.s32.totalorder %s27, 2
      %p113 = por %p111, %p112
      %p114 = scmp.ne.s32.totalorder %s105, %s106
      %p115 = scmp.eq.s32.totalorder %s27, 0
      %p116 = por %p114, %p115
      %p117 = scmp.ne.s32.totalorder %s105, %s106
      %p118 = scmp.eq.s32.totalorder %s28, 2
      %p119 = por %p117, %p118
      %p121 = scmp.ne.s32.totalorder %s106, %s120
      %p122 = scmp.eq.s32.totalorder %s28, 0
      %p123 = por %p121, %p122
      %s125 = sadd.s32 %s124, 1
      %p128 = scmp.eq.s32.totalorder %s22, 2
      %p129 = scmp.ne.s32.totalorder %s124, %s126
      %p130 = scmp.eq.s32.totalorder %s22, 0
      %p131 = por %p129, %p130
      %p132 = scmp.ne.s32.totalorder %s124, %s126
      %p133 = scmp.eq.s32.totalorder %s27, 2
      %p134 = por %p132, %p133
      %p135 = scmp.ne.s32.totalorder %s126, %s127
      %p136 = scmp.eq.s32.totalorder %s27, 0
      %p137 = por %p135, %p136
      %p138 = scmp.ne.s32.totalorder %s126, %s127
      %p139 = scmp.eq.s32.totalorder %s28, 2
      %p140 = por %p138, %p139
      %p142 = scmp.ne.s32.totalorder %s127, %s141
      %p143 = scmp.eq.s32.totalorder %s28, 0
      %p144 = por %p142, %p143
      %s146 = sadd.s32 %s145, 1
      %p149 = scmp.eq.s32.totalorder %s22, 2
      %p150 = scmp.ne.s32.totalorder %s145, %s147
      %p151 = scmp.eq.s32.totalorder %s22, 0
      %p152 = por %p150, %p151
      %p153 = scmp.ne.s32.totalorder %s145, %s147
      %p154 = scmp.eq.s32.totalorder %s27, 2
      %p155 = por %p153, %p154
      %p156 = scmp.ne.s32.totalorder %s147, %s148
      %p157 = scmp.eq.s32.totalorder %s27, 0
      %p158 = por %p156, %p157
      %p159 = scmp.ne.s32.totalorder %s147, %s148
      %p160 = scmp.eq.s32.totalorder %s28, 2
      %p161 = por %p159, %p160
      %p163 = scmp.ne.s32.totalorder %s148, %s162
      %p164 = scmp.eq.s32.totalorder %s28, 0
      %p165 = por %p163, %p164
      %s167 = sadd.s32 %s166, 1
      %p170 = scmp.eq.s32.totalorder %s22, 2
      %p171 = scmp.ne.s32.totalorder %s166, %s168
      %p172 = scmp.eq.s32.totalorder %s22, 0
      %p173 = por %p171, %p172
      %p174 = scmp.ne.s32.totalorder %s166, %s168
      %p175 = scmp.eq.s32.totalorder %s27, 2
      %p176 = por %p174, %p175
      %p177 = scmp.ne.s32.totalorder %s168, %s169
      %p178 = scmp.eq.s32.totalorder %s27, 0
      %p179 = por %p177, %p178
      %p180 = scmp.ne.s32.totalorder %s168, %s169
      %p181 = scmp.eq.s32.totalorder %s28, 2
      %p182 = por %p180, %p181
      %p184 = scmp.ne.s32.totalorder %s169, %s183
      %p185 = scmp.eq.s32.totalorder %s28, 0
      %p186 = por %p184, %p185
      %s188 = sadd.s32 %s187, 1
      %p191 = scmp.eq.s32.totalorder %s22, 2
      %p192 = scmp.ne.s32.totalorder %s187, %s189
      %p193 = scmp.eq.s32.totalorder %s22, 0
      %p194 = por %p192, %p193
      %p195 = scmp.ne.s32.totalorder %s187, %s189
      %p196 = scmp.eq.s32.totalorder %s27, 2
      %p197 = por %p195, %p196
      %p198 = scmp.ne.s32.totalorder %s189, %s190
      %p199 = scmp.eq.s32.totalorder %s27, 0
      %p200 = por %p198, %p199
      %p201 = scmp.ne.s32.totalorder %s189, %s190
      %p202 = scmp.eq.s32.totalorder %s28, 2
      %p203 = por %p201, %p202
      %p205 = scmp.ne.s32.totalorder %s190, %s204
      %p206 = scmp.eq.s32.totalorder %s28, 0
      %p207 = por %p205, %p206
      %s209 = sadd.s32 %s208, 1
      %p212 = scmp.eq.s32.totalorder %s22, 2
      %p213 = scmp.ne.s32.totalorder %s208, %s210
      %p214 = scmp.eq.s32.totalorder %s22, 0
      %p215 = por %p213, %p214
      %p216 = scmp.ne.s32.totalorder %s208, %s210
      %p217 = scmp.eq.s32.totalorder %s27, 2
      %p218 = por %p216, %p217
      %p219 = scmp.ne.s32.totalorder %s210, %s211
      %p220 = scmp.eq.s32.totalorder %s27, 0
      %p221 = por %p219, %p220
      %p222 = scmp.ne.s32.totalorder %s210, %s211
      %p223 = scmp.eq.s32.totalorder %s28, 2
      %p224 = por %p222, %p223
      %p226 = scmp.ne.s32.totalorder %s211, %s225
      %p227 = scmp.eq.s32.totalorder %s28, 0
      %p228 = por %p226, %p227
      %s230 = sadd.s32 %s229, 1
      %p233 = scmp.eq.s32.totalorder %s22, 2
      %p234 = scmp.ne.s32.totalorder %s229, %s231
      %p235 = scmp.eq.s32.totalorder %s22, 0
      %p236 = por %p234, %p235
      %p237 = scmp.ne.s32.totalorder %s229, %s231
      %p238 = scmp.eq.s32.totalorder %s27, 2
      %p239 = por %p237, %p238
      %p240 = scmp.ne.s32.totalorder %s231, %s232
      %p241 = scmp.eq.s32.totalorder %s27, 0
      %p242 = por %p240, %p241
      %p243 = scmp.ne.s32.totalorder %s231, %s232
      %p244 = scmp.eq.s32.totalorder %s28, 2
      %p245 = por %p243, %p244
      %p247 = scmp.ne.s32.totalorder %s232, %s246
      %p248 = scmp.eq.s32.totalorder %s28, 0
      %p249 = por %p247, %p248
      %s251 = sadd.s32 %s250, 1
      %p254 = scmp.eq.s32.totalorder %s22, 2
      %p255 = scmp.ne.s32.totalorder %s250, %s252
      %p256 = scmp.eq.s32.totalorder %s22, 0
      %p257 = por %p255, %p256
      %p258 = scmp.ne.s32.totalorder %s250, %s252
      %p259 = scmp.eq.s32.totalorder %s27, 2
      %p260 = por %p258, %p259
      %p261 = scmp.ne.s32.totalorder %s252, %s253
      %p262 = scmp.eq.s32.totalorder %s27, 0
      %p263 = por %p261, %p262
      %p264 = scmp.ne.s32.totalorder %s252, %s253
      %p265 = scmp.eq.s32.totalorder %s28, 2
      %p266 = por %p264, %p265
      %p268 = scmp.ne.s32.totalorder %s253, %s267
      %p269 = scmp.eq.s32.totalorder %s28, 0
      %p270 = por %p268, %p269
      %s272 = sadd.s32 %s271, 1
      %p275 = scmp.eq.s32.totalorder %s22, 2
      %p276 = scmp.ne.s32.totalorder %s271, %s273
      %p277 = scmp.eq.s32.totalorder %s22, 0
      %p278 = por %p276, %p277
      %p279 = scmp.ne.s32.totalorder %s271, %s273
      %p280 = scmp.eq.s32.totalorder %s27, 2
      %p281 = por %p279, %p280
      %p282 = scmp.ne.s32.totalorder %s273, %s274
      %p283 = scmp.eq.s32.totalorder %s27, 0
      %p284 = por %p282, %p283
      %p285 = scmp.ne.s32.totalorder %s273, %s274
      %p286 = scmp.eq.s32.totalorder %s28, 2
      %p287 = por %p285, %p286
      %p289 = scmp.ne.s32.totalorder %s274, %s288
      %p290 = scmp.eq.s32.totalorder %s28, 0
      %p291 = por %p289, %p290
      %s293 = sadd.s32 %s292, 1
      %p296 = scmp.eq.s32.totalorder %s22, 2
      %p297 = scmp.ne.s32.totalorder %s292, %s294
      %p298 = scmp.eq.s32.totalorder %s22, 0
      %p299 = por %p297, %p298
      %p300 = scmp.ne.s32.totalorder %s292, %s294
      %p301 = scmp.eq.s32.totalorder %s27, 2
      %p302 = por %p300, %p301
      %p303 = scmp.ne.s32.totalorder %s294, %s295
      %p304 = scmp.eq.s32.totalorder %s27, 0
      %p305 = por %p303, %p304
      %p306 = scmp.ne.s32.totalorder %s294, %s295
      %p307 = scmp.eq.s32.totalorder %s28, 2
      %p308 = por %p306, %p307
      %p310 = scmp.ne.s32.totalorder %s295, %s309
      %p311 = scmp.eq.s32.totalorder %s28, 0
      %p312 = por %p310, %p311
      %s314 = sadd.s32 %s313, 1
      %p317 = scmp.eq.s32.totalorder %s22, 2
      %p318 = scmp.ne.s32.totalorder %s313, %s315
      %p319 = scmp.eq.s32.totalorder %s22, 0
      %p320 = por %p318, %p319
      %p321 = scmp.ne.s32.totalorder %s313, %s315
      %p322 = scmp.eq.s32.totalorder %s27, 2
      %p323 = por %p321, %p322
      %p324 = scmp.ne.s32.totalorder %s315, %s316
      %p325 = scmp.eq.s32.totalorder %s27, 0
      %p326 = por %p324, %p325
      %p327 = scmp.ne.s32.totalorder %s315, %s316
      %p328 = scmp.eq.s32.totalorder %s28, 2
      %p329 = por %p327, %p328
      %p331 = scmp.ne.s32.totalorder %s316, %s330
      %p332 = scmp.eq.s32.totalorder %s28, 0
      %p333 = por %p331, %p332
      %s334 = ssub.s32 %s22, %s29
      %p335 = scmp.eq.s32.totalorder %s334, 0
      %s337 = sadd.s32 %s336, 1
      %s338 = scalar_select %p335, %s336, %s337
      %p341 = pneg %p335
      %p342 = scmp.eq.s32.totalorder %s22, 2
      %p343 = por %p341, %p342
      %p344 = scmp.ne.s32.totalorder %s336, %s339
      %p345 = scmp.eq.s32.totalorder %s22, 0
      %p346 = por %p344, %p345
      %p347 = scmp.ne.s32.totalorder %s336, %s339
      %p348 = scmp.eq.s32.totalorder %s27, 2
      %p349 = por %p347, %p348
      %p350 = scmp.ne.s32.totalorder %s339, %s340
      %p351 = scmp.eq.s32.totalorder %s27, 0
      %p352 = por %p350, %p351
      %p353 = scmp.ne.s32.totalorder %s339, %s340
      %p354 = scmp.eq.s32.totalorder %s28, 2
      %p355 = por %p353, %p354
      %p357 = scmp.ne.s32.totalorder %s340, %s356
      %p358 = scmp.eq.s32.totalorder %s28, 0
      %p359 = por %p357, %p358
      %s360 = ssub.s32 %s22, %s29
      %p361 = scmp.eq.s32.totalorder %s360, 0
      %s363 = sadd.s32 %s362, 1
      %s364 = scalar_select %p361, %s362, %s363
      %p367 = pneg %p361
      %p368 = scmp.eq.s32.totalorder %s22, 2
      %p369 = por %p367, %p368
      %p370 = scmp.ne.s32.totalorder %s362, %s365
      %p371 = scmp.eq.s32.totalorder %s22, 0
      %p372 = por %p370, %p371
      %p373 = scmp.ne.s32.totalorder %s362, %s365
      %p374 = scmp.eq.s32.totalorder %s27, 2
      %p375 = por %p373, %p374
      %p376 = scmp.ne.s32.totalorder %s365, %s366
      %p377 = scmp.eq.s32.totalorder %s27, 0
      %p378 = por %p376, %p377
      %p379 = scmp.ne.s32.totalorder %s365, %s366
      %p380 = scmp.eq.s32.totalorder %s28, 2
      %p381 = por %p379, %p380
      %p383 = scmp.ne.s32.totalorder %s366, %s382
      %p384 = scmp.eq.s32.totalorder %s28, 0
      %p385 = por %p383, %p384
      %p386 = scmp.le.s32.totalorder 1, %s22
      %p387 = scmp.lt.s32.totalorder %s22, 4
      %p388 = pnand %p386, %p387
      %p389 = pneg %p388
      // Predicated region
      $region9: #{tpu_custom_call.1} parent=5 // pred_check
        _
      $region10: #{tpu_custom_call.1} parent=5 // pred_check_branch
        %391 = sbr.rel (%p388) target = $region12
      $region11: #{tpu_custom_call.1} parent=5 // pred_region
        %s392 = ssub.s32 %s22, 1
        // Predicated region
        $region13: #{tpu_custom_call.1} parent=11 // pred_check
          %p393 = pneg %p95
        $region14: #{tpu_custom_call.1} parent=11 // pred_check_branch
          %395 = sbr.rel (%p393) target = $region16
        $region15: #{tpu_custom_call.1} parent=11 // pred_region
          _
        $region16: #{tpu_custom_call.1} parent=11 // pred_fallthru
          _
        // Predicated region
        $region17: #{tpu_custom_call.1} parent=11 // pred_check
          %p396 = pneg %p116
        $region18: #{tpu_custom_call.1} parent=11 // pred_check_branch
          %398 = sbr.rel (%p396) target = $region20
        $region19: #{tpu_custom_call.1} parent=11 // pred_region
          _
        $region20: #{tpu_custom_call.1} parent=11 // pred_fallthru
          _
        // Predicated region
        $region21: #{tpu_custom_call.1} parent=11 // pred_check
          %p399 = pneg %p137
        $region22: #{tpu_custom_call.1} parent=11 // pred_check_branch
          %401 = sbr.rel (%p399) target = $region24
        $region23: #{tpu_custom_call.1} parent=11 // pred_region
          _
        $region24: #{tpu_custom_call.1} parent=11 // pred_fallthru
          _
        // Predicated region
        $region25: #{tpu_custom_call.1} parent=11 // pred_check
          %p402 = pneg %p158
        $region26: #{tpu_custom_call.1} parent=11 // pred_check_branch
          %404 = sbr.rel (%p402) target = $region28
        $region27: #{tpu_custom_call.1} parent=11 // pred_region
          _
        $region28: #{tpu_custom_call.1} parent=11 // pred_fallthru
          _
        // Predicated region
        $region29: #{tpu_custom_call.1} parent=11 // pred_check
          %p405 = pneg %p179
        $region30: #{tpu_custom_call.1} parent=11 // pred_check_branch
          %407 = sbr.rel (%p405) target = $region32
        $region31: #{tpu_custom_call.1} parent=11 // pred_region
          _
        $region32: #{tpu_custom_call.1} parent=11 // pred_fallthru
          _
        // Predicated region
        $region33: #{tpu_custom_call.1} parent=11 // pred_check
          %p408 = pneg %p200
        $region34: #{tpu_custom_call.1} parent=11 // pred_check_branch
          %410 = sbr.rel (%p408) target = $region36
        $region35: #{tpu_custom_call.1} parent=11 // pred_region
          _
        $region36: #{tpu_custom_call.1} parent=11 // pred_fallthru
          _
        // Predicated region
        $region37: #{tpu_custom_call.1} parent=11 // pred_check
          %p411 = pneg %p221
        $region38: #{tpu_custom_call.1} parent=11 // pred_check_branch
          %413 = sbr.rel (%p411) target = $region40
        $region39: #{tpu_custom_call.1} parent=11 // pred_region
          _
        $region40: #{tpu_custom_call.1} parent=11 // pred_fallthru
          _
        // Predicated region
        $region41: #{tpu_custom_call.1} parent=11 // pred_check
          %p414 = pneg %p242
        $region42: #{tpu_custom_call.1} parent=11 // pred_check_branch
          %416 = sbr.rel (%p414) target = $region44
        $region43: #{tpu_custom_call.1} parent=11 // pred_region
          _
        $region44: #{tpu_custom_call.1} parent=11 // pred_fallthru
          _
        // Predicated region
        $region45: #{tpu_custom_call.1} parent=11 // pred_check
          %p417 = pneg %p263
        $region46: #{tpu_custom_call.1} parent=11 // pred_check_branch
          %419 = sbr.rel (%p417) target = $region48
        $region47: #{tpu_custom_call.1} parent=11 // pred_region
          _
        $region48: #{tpu_custom_call.1} parent=11 // pred_fallthru
          _
        // Predicated region
        $region49: #{tpu_custom_call.1} parent=11 // pred_check
          %p420 = pneg %p284
        $region50: #{tpu_custom_call.1} parent=11 // pred_check_branch
          %422 = sbr.rel (%p420) target = $region52
        $region51: #{tpu_custom_call.1} parent=11 // pred_region
          _
        $region52: #{tpu_custom_call.1} parent=11 // pred_fallthru
          _
        // Predicated region
        $region53: #{tpu_custom_call.1} parent=11 // pred_check
          %p423 = pneg %p305
        $region54: #{tpu_custom_call.1} parent=11 // pred_check_branch
          %425 = sbr.rel (%p423) target = $region56
        $region55: #{tpu_custom_call.1} parent=11 // pred_region
          _
        $region56: #{tpu_custom_call.1} parent=11 // pred_fallthru
          _
        // Predicated region
        $region57: #{tpu_custom_call.1} parent=11 // pred_check
          %p426 = pneg %p326
        $region58: #{tpu_custom_call.1} parent=11 // pred_check_branch
          %428 = sbr.rel (%p426) target = $region60
        $region59: #{tpu_custom_call.1} parent=11 // pred_region
          _
        $region60: #{tpu_custom_call.1} parent=11 // pred_fallthru
          _
      $region12: #{tpu_custom_call.1} parent=5 // pred_fallthru
        _
      %p429 = scmp.lt.s32.totalorder %s22, 3
      // Predicated region
      $region61: #{tpu_custom_call.1} parent=5 // pred_check
        %p430 = pneg %p429
      $region62: #{tpu_custom_call.1} parent=5 // pred_check_branch
        %432 = sbr.rel (%p430) target = $region64
      $region63: #{tpu_custom_call.1} parent=5 // pred_region
        // Predicated region
        $region65: #{tpu_custom_call.1} parent=63 // pred_check
          %p433 = pneg %p42
        $region66: #{tpu_custom_call.1} parent=63 // pred_check_branch
          %435 = sbr.rel (%p433) target = $region68
        $region67: #{tpu_custom_call.1} parent=63 // pred_region
          %s436 = smul.u32 2, %s22
          %s437 = ssub.s32 5, %s436
          %p438 = scmp.lt.s32.totalorder %s437, 2
          %s439 = scalar_select %p438, %s437, 2
          %s440 = smul.u32 8, %s439
          %p441 = scmp.lt.s32.totalorder %s436, 4
          %s442 = scalar_select %p441, %s436, 4
          %s443 = smul.addr %s442, 8
          %s444 = scalar_lea.vmem %s0, %s443
          %s445 = smul.u32 2, %s22
          %s446 = ssub.s32 5, %s445
          %p447 = scmp.lt.s32.totalorder %s446, 2
          %s448 = scalar_select %p447, %s446, 2
          %s449 = smul.u32 8, %s448
        $region68: #{tpu_custom_call.1} parent=63 // pred_fallthru
          _
        // Predicated region
        $region69: #{tpu_custom_call.1} parent=63 // pred_check
          %p450 = pneg %p68
        $region70: #{tpu_custom_call.1} parent=63 // pred_check_branch
          %452 = sbr.rel (%p450) target = $region72
        $region71: #{tpu_custom_call.1} parent=63 // pred_region
          %s453 = smul.u32 2, %s22
          %s454 = ssub.s32 5, %s453
          %p455 = scmp.lt.s32.totalorder %s454, 2
          %s456 = scalar_select %p455, %s454, 2
          %s457 = smul.u32 8, %s456
          %p458 = scmp.lt.s32.totalorder %s453, 4
          %s459 = scalar_select %p458, %s453, 4
          %s460 = smul.addr %s459, 8
          %s461 = scalar_lea.vmem %s1, %s460
          %s462 = smul.u32 2, %s22
          %s463 = ssub.s32 5, %s462
          %p464 = scmp.lt.s32.totalorder %s463, 2
          %s465 = scalar_select %p464, %s463, 2
          %s466 = smul.u32 8, %s465
        $region72: #{tpu_custom_call.1} parent=63 // pred_fallthru
          _
      $region64: #{tpu_custom_call.1} parent=5 // pred_fallthru
        _
      %p467 = scmp.le.s32.totalorder 1, %s22
      %p468 = scmp.lt.s32.totalorder %s22, 4
      %p469 = pnand %p467, %p468
      %p470 = pneg %p469
      // Predicated region
      $region73: #{tpu_custom_call.1} parent=5 // pred_check
        _
      $region74: #{tpu_custom_call.1} parent=5 // pred_check_branch
        %472 = sbr.rel (%p469) target = $region76
      $region75: #{tpu_custom_call.1} parent=5 // pred_region
        %s473 = ssub.s32 %s22, 1
        %s474 = smul.u32 2, %s27
        %s475 = ssub.s32 5, %s474
        %p476 = scmp.lt.s32.totalorder %s475, 2
        %s477 = scalar_select %p476, %s475, 2
        %s478 = smul.u32 8, %s477
        %p479 = scmp.lt.s32.totalorder %s474, 4
        %s480 = scalar_select %p479, %s474, 4
        %s481 = smul.addr %s480, 8
        %s482 = scalar_lea.vmem %s0, %s481
        %p483 = pneg %p48
        %p484 = pneg %p45
        %s485 = smul.u32 2, %s27
        %s486 = ssub.s32 5, %s485
        %p487 = scmp.lt.s32.totalorder %s486, 2
        %s488 = scalar_select %p487, %s486, 2
        %s489 = smul.u32 8, %s488
        %p490 = scmp.lt.s32.totalorder %s485, 4
        %s491 = scalar_select %p490, %s485, 4
        %s492 = smul.addr %s491, 8
        %s493 = scalar_lea.vmem %s1, %s492
        %p494 = pneg %p74
        %p495 = pneg %p71
        %p496 = pneg %p95
        %p497 = pneg %p92
        %p498 = pneg %p116
        %p499 = pneg %p113
        %p500 = pneg %p137
        %p501 = pneg %p134
        %p502 = pneg %p158
        %p503 = pneg %p155
        %p504 = pneg %p179
        %p505 = pneg %p176
        %p506 = pneg %p200
        %p507 = pneg %p197
        %p508 = pneg %p221
        %p509 = pneg %p218
        %p510 = pneg %p242
        %p511 = pneg %p239
        %p512 = pneg %p263
        %p513 = pneg %p260
        %p514 = pneg %p284
        %p515 = pneg %p281
        %p516 = pneg %p305
        %p517 = pneg %p302
        %p518 = pneg %p326
        %p519 = pneg %p323
        %p520 = pneg %p352
        %p521 = pneg %p349
        %s522 = sand.u32 %s339, 1
        %s523 = sand.u32 %s339, 1
        %s524 = smul.addr %s523, 16
        %s525 = scalar_lea.vmem [#allocation2], %s524
        %p526 = pneg %p378
        %p527 = pneg %p375
        %s528 = sand.u32 %s365, 1
        %s529 = sand.u32 %s365, 1
        %s530 = smul.addr %s529, 16
        %s531 = scalar_lea.vmem [#allocation3], %s530
        %s532 = smul.u32 2, %s27
        %s533 = ssub.s32 5, %s532
        %p534 = scmp.lt.s32.totalorder %s533, 2
        %s535 = scalar_select %p534, %s533, 2
        %s536 = smul.u32 8, %s535
        %p537 = scmp.lt.s32.totalorder %s532, 4
        %s538 = scalar_select %p537, %s532, 4
        %s539 = smul.addr %s538, 8
        %s540 = scalar_lea.vmem %s0, %s539
        %s541 = smul.u32 2, %s27
        %s542 = ssub.s32 5, %s541
        %p543 = scmp.lt.s32.totalorder %s542, 2
        %s544 = scalar_select %p543, %s542, 2
        %s545 = smul.u32 8, %s544
        %s546 = smul.u32 2, %s27
        %s547 = ssub.s32 5, %s546
        %p548 = scmp.lt.s32.totalorder %s547, 2
        %s549 = scalar_select %p548, %s547, 2
        %s550 = smul.u32 8, %s549
        %p551 = scmp.lt.s32.totalorder %s546, 4
        %s552 = scalar_select %p551, %s546, 4
        %s553 = smul.addr %s552, 8
        %s554 = scalar_lea.vmem %s1, %s553
        %s555 = smul.u32 2, %s27
        %s556 = ssub.s32 5, %s555
        %p557 = scmp.lt.s32.totalorder %s556, 2
        %s558 = scalar_select %p557, %s556, 2
        %s559 = smul.u32 8, %s558
        %s560 = smul.u32 2, %s27
        %s561 = ssub.s32 5, %s560
        %p562 = scmp.lt.s32.totalorder %s561, 2
        %s563 = scalar_select %p562, %s561, 2
        %s564 = smul.u32 8, %s563
        %s565 = smul.u32 2, %s27
        %s566 = ssub.s32 5, %s565
        %p567 = scmp.lt.s32.totalorder %s566, 2
        %s568 = scalar_select %p567, %s566, 2
        %s569 = smul.u32 8, %s568
        %v570 = vld [vmem:[%s540] sm:$0xff]
        %v571 = vld [vmem:[%s540 + $0x8] sm:$0xff]
        %v572 = vld [vmem:[%s2] sm:$0xff]
        %v573 = vld [vmem:[%s2 + $0x8] sm:$0xff]
        %v574 = vld [vmem:[%s2 + $0x10] sm:$0xf]
        %v575 = vld [vmem:[%s3] sm:$0x1]
        %v577 = vperm.slane %v575, 0
        %vm579 = vcmask 162816
        %v581 = vsel %vm579, %v570, 0
        %v584 = vsel %vm579, %v571, 0
        %vm586 = vcmask 1043456
        %v588 = vsel %vm586, %v574, 0
        %590 = vmatpush.msra.mxu0 0.0
        %591 = vmatpush.msra.mxu0 0.0
        %592 = vmatpush.msra.mxu0 0.0
        %593 = vmatpush.msra.mxu0 0.0
        %594 = vmatpush.msra.mxu0 0.0
        %595 = vmatpush.msra.mxu0 0.0
        %596 = vmatpush.msra.mxu0 0.0
        %597 = vmatpush.msra.mxu0 0.0
        %598 = vmatpush.msra.mxu0 0.0
        %599 = vmatpush.msra.mxu0 0.0
        %600 = vmatpush.msra.mxu0 0.0
        %601 = vmatpush.msra.mxu0 0.0
        %602 = vmatpush.msra.mxu0 0.0
        %603 = vmatpush.msra.mxu0 %v588
        %604 = vmatpush.msra.mxu0 %v573
        %605 = vmatpush.msra.mxu0 %v572
        %606 = vmatmul.f32.gmra.mxu0 %v581
        %v607 = vpop.f32.mrf.mxu0
        %v608 = vadd.f32 %v577, %v607
        %609 = vmatmul.f32.gmra.mxu0 %v584
        %v610 = vpop.f32.mrf.mxu0
        %v611 = vadd.f32 %v577, %v610
        %612 = vdwg.mxu0
        %v613 = vmax.f32 %v608, 0.0
        %v614 = vmax.f32 %v611, 0.0
        %v615 = vld [vmem:[%s4] sm:$0xff]
        %v616 = vld [vmem:[%s4 + $0x8] sm:$0xff]
        %v617 = vld [vmem:[%s4 + $0x10] sm:$0xff]
        %v618 = vld [vmem:[%s4 + $0x18] sm:$0xff]
        %v619 = vld [vmem:[%s4 + $0x20] sm:$0xff]
        %v620 = vld [vmem:[%s4 + $0x28] sm:$0xff]
        %v621 = vld [vmem:[%s4 + $0x30] sm:$0xff]
        %v622 = vld [vmem:[%s4 + $0x38] sm:$0xff]
        %v623 = vld [vmem:[%s4 + $0x40] sm:$0xff]
        %v624 = vld [vmem:[%s4 + $0x48] sm:$0xff]
        %v625 = vld [vmem:[%s4 + $0x50] sm:$0xff]
        %v626 = vld [vmem:[%s4 + $0x58] sm:$0xff]
        %v627 = vld [vmem:[%s4 + $0x60] sm:$0xff]
        %v628 = vld [vmem:[%s4 + $0x68] sm:$0xff]
        %v629 = vld [vmem:[%s4 + $0x70] sm:$0xff]
        %v630 = vld [vmem:[%s4 + $0x78] sm:$0xff]
        %v631 = vld [vmem:[%s4 + $0x80] sm:$0xff]
        %v632 = vld [vmem:[%s4 + $0x88] sm:$0xff]
        %v633 = vld [vmem:[%s4 + $0x90] sm:$0xff]
        %v634 = vld [vmem:[%s4 + $0x98] sm:$0xff]
        %v635 = vld [vmem:[%s5] sm:$0x3]
        %v637 = vperm.slane %v635, 0
        %v638 = vperm.slane %v635, 1
        %vm641 = vcmask 654336
        %v643 = vsel %vm641, %v613, 0
        %v646 = vsel %vm641, %v614, 0
        %648 = vmatpush.msra.mxu0 0.0
        %649 = vmatpush.msra.mxu0 0.0
        %650 = vmatpush.msra.mxu0 0.0
        %651 = vmatpush.msra.mxu0 0.0
        %652 = vmatpush.msra.mxu0 0.0
        %653 = vmatpush.msra.mxu0 0.0
        %654 = vmatpush.msra.mxu0 %v633
        %655 = vmatpush.msra.mxu0 %v631
        %656 = vmatpush.msra.mxu0 %v629
        %657 = vmatpush.msra.mxu0 %v627
        %658 = vmatpush.msra.mxu0 %v625
        %659 = vmatpush.msra.mxu0 %v623
        %660 = vmatpush.msra.mxu0 %v621
        %661 = vmatpush.msra.mxu0 %v619
        %662 = vmatpush.msra.mxu0 %v617
        %663 = vmatpush.msra.mxu0 %v615
        %664 = vmatmul.f32.gmra.mxu0 %v643
        %v665 = vpop.f32.mrf.mxu0
        %v666 = vadd.f32 %v637, %v665
        %667 = vmatmul.f32.gmra.mxu0 %v646
        %v668 = vpop.f32.mrf.mxu0
        %v669 = vadd.f32 %v637, %v668
        %670 = vdwg.mxu0
        %671 = vmatpush.msra.mxu0 0.0
        %672 = vmatpush.msra.mxu0 0.0
        %673 = vmatpush.msra.mxu0 0.0
        %674 = vmatpush.msra.mxu0 0.0
        %675 = vmatpush.msra.mxu0 0.0
        %676 = vmatpush.msra.mxu0 0.0
        %677 = vmatpush.msra.mxu0 %v634
        %678 = vmatpush.msra.mxu0 %v632
        %679 = vmatpush.msra.mxu0 %v630
        %680 = vmatpush.msra.mxu0 %v628
        %681 = vmatpush.msra.mxu0 %v626
        %682 = vmatpush.msra.mxu0 %v624
        %683 = vmatpush.msra.mxu0 %v622
        %684 = vmatpush.msra.mxu0 %v620
        %685 = vmatpush.msra.mxu0 %v618
        %686 = vmatpush.msra.mxu0 %v616
        %687 = vmatmul.f32.gmra.mxu0 %v643
        %v688 = vpop.f32.mrf.mxu0
        %v689 = vadd.f32 %v638, %v688
        %690 = vmatmul.f32.gmra.mxu0 %v646
        %v691 = vpop.f32.mrf.mxu0
        %v692 = vadd.f32 %v638, %v691
        %693 = vdwg.mxu0
        %v694 = vmax.f32 %v666, 0.0
        %v695 = vmax.f32 %v689, 0.0
        %v696 = vmax.f32 %v669, 0.0
        %v697 = vmax.f32 %v692, 0.0
        %v698 = vld [vmem:[%s6] sm:$0xff]
        %v699 = vld [vmem:[%s6 + $0x8] sm:$0xff]
        %v700 = vld [vmem:[%s6 + $0x10] sm:$0xff]
        %v701 = vld [vmem:[%s6 + $0x18] sm:$0xff]
        %v702 = vld [vmem:[%s6 + $0x20] sm:$0xff]
        %v703 = vld [vmem:[%s6 + $0x28] sm:$0xff]
        %v704 = vld [vmem:[%s6 + $0x30] sm:$0xff]
        %v705 = vld [vmem:[%s6 + $0x38] sm:$0xff]
        %v706 = vld [vmem:[%s6 + $0x40] sm:$0xff]
        %v707 = vld [vmem:[%s6 + $0x48] sm:$0xff]
        %v708 = vld [vmem:[%s6 + $0x50] sm:$0xff]
        %v709 = vld [vmem:[%s6 + $0x58] sm:$0xff]
        %v710 = vld [vmem:[%s6 + $0x60] sm:$0xff]
        %v711 = vld [vmem:[%s6 + $0x68] sm:$0xff]
        %v712 = vld [vmem:[%s6 + $0x70] sm:$0xff]
        %v713 = vld [vmem:[%s6 + $0x78] sm:$0xff]
        %v714 = vld [vmem:[%s6 + $0x80] sm:$0xff]
        %v715 = vld [vmem:[%s6 + $0x88] sm:$0xff]
        %v716 = vld [vmem:[%s6 + $0x90] sm:$0xff]
        %v717 = vld [vmem:[%s6 + $0x98] sm:$0xff]
        %v718 = vld [vmem:[%s7] sm:$0x1]
        %v720 = vperm.slane %v718, 0
        %vm722 = vcmask 261120
        %v724 = vsel %vm722, %v695, 0
        %v727 = vsel %vm722, %v697, 0
        %729 = vmatpush.msra.mxu0 %v713
        %730 = vmatpush.msra.mxu0 %v712
        %731 = vmatpush.msra.mxu0 %v711
        %732 = vmatpush.msra.mxu0 %v710
        %733 = vmatpush.msra.mxu0 %v709
        %734 = vmatpush.msra.mxu0 %v708
        %735 = vmatpush.msra.mxu0 %v707
        %736 = vmatpush.msra.mxu0 %v706
        %737 = vmatpush.msra.mxu0 %v705
        %738 = vmatpush.msra.mxu0 %v704
        %739 = vmatpush.msra.mxu0 %v703
        %740 = vmatpush.msra.mxu0 %v702
        %741 = vmatpush.msra.mxu0 %v701
        %742 = vmatpush.msra.mxu0 %v700
        %743 = vmatpush.msra.mxu0 %v699
        %744 = vmatpush.msra.mxu0 %v698
        %745 = vmatmul.f32.gmra.mxu0 %v694
        %v746 = vpop.f32.mrf.mxu0
        %v747 = vadd.f32 %v720, %v746
        %748 = vmatmul.f32.gmra.mxu0 %v696
        %v749 = vpop.f32.mrf.mxu0
        %v750 = vadd.f32 %v720, %v749
        %751 = vdwg.mxu0
        %752 = vmatpush.msra.mxu0 0.0
        %753 = vmatpush.msra.mxu0 0.0
        %754 = vmatpush.msra.mxu0 0.0
        %755 = vmatpush.msra.mxu0 0.0
        %756 = vmatpush.msra.mxu0 0.0
        %757 = vmatpush.msra.mxu0 0.0
        %758 = vmatpush.msra.mxu0 0.0
        %759 = vmatpush.msra.mxu0 0.0
        %760 = vmatpush.msra.mxu0 0.0
        %761 = vmatpush.msra.mxu0 0.0
        %762 = vmatpush.msra.mxu0 0.0
        %763 = vmatpush.msra.mxu0 0.0
        %764 = vmatpush.msra.mxu0 %v717
        %765 = vmatpush.msra.mxu0 %v716
        %766 = vmatpush.msra.mxu0 %v715
        %767 = vmatpush.msra.mxu0 %v714
        %768 = vmatmul.f32.gmra.mxu0 %v724
        %v769 = vpop.f32.mrf.mxu0
        %v770 = vadd.f32 %v747, %v769
        %771 = vmatmul.f32.gmra.mxu0 %v727
        %v772 = vpop.f32.mrf.mxu0
        %v773 = vadd.f32 %v750, %v772
        %774 = vdwg.mxu0
        %v775 = vmax.f32 %v770, 0.0
        %v776 = vmax.f32 %v773, 0.0
        %v777 = vld [vmem:[%s8] sm:$0xff]
        %v778 = vld [vmem:[%s8 + $0x8] sm:$0xff]
        %v779 = vld [vmem:[%s8 + $0x10] sm:$0xf]
        %v780 = vld [vmem:[%s9] sm:$0x1]
        %v782 = vperm.slane %v780, 0
        %v785 = vsel %vm579, %v775, 0
        %v788 = vsel %vm579, %v776, 0
        %v791 = vsel %vm586, %v779, 0
        %793 = vmatpush.msra.mxu0 0.0
        %794 = vmatpush.msra.mxu0 0.0
        %795 = vmatpush.msra.mxu0 0.0
        %796 = vmatpush.msra.mxu0 0.0
        %797 = vmatpush.msra.mxu0 0.0
        %798 = vmatpush.msra.mxu0 0.0
        %799 = vmatpush.msra.mxu0 0.0
        %800 = vmatpush.msra.mxu0 0.0
        %801 = vmatpush.msra.mxu0 0.0
        %802 = vmatpush.msra.mxu0 0.0
        %803 = vmatpush.msra.mxu0 0.0
        %804 = vmatpush.msra.mxu0 0.0
        %805 = vmatpush.msra.mxu0 0.0
        %806 = vmatpush.msra.mxu0 %v791
        %807 = vmatpush.msra.mxu0 %v778
        %808 = vmatpush.msra.mxu0 %v777
        %809 = vmatmul.f32.gmra.mxu0 %v785
        %v810 = vpop.f32.mrf.mxu0
        %v811 = vadd.f32 %v782, %v810
        %812 = vmatmul.f32.gmra.mxu0 %v788
        %v813 = vpop.f32.mrf.mxu0
        %v814 = vadd.f32 %v782, %v813
        %815 = vdwg.mxu0
        %v816 = vmax.f32 %v811, 0.0
        %v817 = vmax.f32 %v814, 0.0
        %v818 = vld [vmem:[%s10] sm:$0xff]
        %v819 = vld [vmem:[%s10 + $0x8] sm:$0xff]
        %v820 = vld [vmem:[%s10 + $0x10] sm:$0xff]
        %v821 = vld [vmem:[%s10 + $0x18] sm:$0xff]
        %v822 = vld [vmem:[%s10 + $0x20] sm:$0xff]
        %v823 = vld [vmem:[%s10 + $0x28] sm:$0xff]
        %v824 = vld [vmem:[%s10 + $0x30] sm:$0xff]
        %v825 = vld [vmem:[%s10 + $0x38] sm:$0xff]
        %v826 = vld [vmem:[%s10 + $0x40] sm:$0xff]
        %v827 = vld [vmem:[%s10 + $0x48] sm:$0xff]
        %v828 = vld [vmem:[%s11] sm:$0x1]
        %v830 = vperm.slane %v828, 0
        %v833 = vsel %vm641, %v816, 0
        %v836 = vsel %vm641, %v817, 0
        %838 = vmatpush.msra.mxu0 0.0
        %839 = vmatpush.msra.mxu0 0.0
        %840 = vmatpush.msra.mxu0 0.0
        %841 = vmatpush.msra.mxu0 0.0
        %842 = vmatpush.msra.mxu0 0.0
        %843 = vmatpush.msra.mxu0 0.0
        %844 = vmatpush.msra.mxu0 %v827
        %845 = vmatpush.msra.mxu0 %v826
        %846 = vmatpush.msra.mxu0 %v825
        %847 = vmatpush.msra.mxu0 %v824
        %848 = vmatpush.msra.mxu0 %v823
        %849 = vmatpush.msra.mxu0 %v822
        %850 = vmatpush.msra.mxu0 %v821
        %851 = vmatpush.msra.mxu0 %v820
        %852 = vmatpush.msra.mxu0 %v819
        %853 = vmatpush.msra.mxu0 %v818
        %854 = vmatmul.f32.gmra.mxu0 %v833
        %v855 = vpop.f32.mrf.mxu0
        %v856 = vadd.f32 %v830, %v855
        %857 = vmatmul.f32.gmra.mxu0 %v836
        %v858 = vpop.f32.mrf.mxu0
        %v859 = vadd.f32 %v830, %v858
        %860 = vdwg.mxu0
        %v861 = vmax.f32 %v856, 0.0
        %v862 = vmax.f32 %v859, 0.0
        %v863 = vld [vmem:[%s554] sm:$0xff]
        %v864 = vld [vmem:[%s554 + $0x8] sm:$0xff]
        %vm865 = vcmp.eq.s32.totalorder %v863, 0
        %vm866 = vcmp.eq.s32.totalorder %v864, 0
        %v867 = vld [vmem:[%s12] sm:$0x3]
        %v868 = vld [vmem:[%s13] sm:$0x1]
        %v869 = vsel %vm865, 1, 0
        %v870 = vsel %vm866, 1, 0
        %871 = vset.pattern.permute.xlu0 0
        %872 = vperm.xlu0 %871, %v869
        %v873 = vpop.permute.xlu0 %872
        %874 = vset.pattern.permute.xlu0 0
        %875 = vperm.xlu0 %874, %v870
        %v876 = vpop.permute.xlu0 %875
        %vm877 = vcmp.eq.s32.totalorder %v873, 1
        %vm878 = vcmp.eq.s32.totalorder %v876, 1
        %v879 = vperm.slane %v867, 0
        %v880 = vperm.slane %v867, 1
        %v881 = vsel %vm877, %v879, %v880
        %v882 = vsel %vm878, %v879, %v880
        %v884 = vperm.slane %v868, 0
        %886 = vrot.lane.b32.xlu0 %v884, 127
        %v887 = vpop.permute.xlu0 %886
        %v889 = vsel %vm865, %v884, %v887
        %v890 = vsel %vm866, %v884, %v887
        %v891 = vmul.f32 %v861, %v881
        %v892 = vmul.f32 %v862, %v882
        %vm893 = vcmask 326656
        %v894 = vsel %vm893, %v891, 0.0
        %895 = vadd.xlane.f32.xlu0 %v894
        %v896 = vpop.xlane.xlu0 %895
        %v897 = vsel %vm893, %v892, 0.0
        %898 = vadd.xlane.f32.xlu0 %v897
        %v899 = vpop.xlane.xlu0 %898
        %v900 = vadd.f32 %v896, %v889
        %v901 = vadd.f32 %v899, %v890
        %902 = vst.msk [vmem:[%s525] sm:$0xff] %vm579, %v775
        %903 = vst.msk [vmem:[%s525 + $0x8] sm:$0xff] %vm579, %v776
        %vm904 = vcmask 7168
        %905 = vst.msk [vmem:[%s531] sm:$0xff] %vm904, %v900
        %906 = vst.msk [vmem:[%s531 + $0x8] sm:$0xff] %vm904, %v901
        %s907 = sand.u32 %s339, 1
        %s908 = sand.u32 %s339, 1
        %s909 = smul.addr %s908, 16
        %s910 = scalar_lea.vmem [#allocation2], %s909
        %s911 = sand.u32 %s365, 1
        %s912 = sand.u32 %s365, 1
        %s913 = smul.addr %s912, 16
        %s914 = scalar_lea.vmem [#allocation3], %s913
        // Predicated region
        $region77: #{tpu_custom_call.1} parent=75 // pred_check
          %p915 = pneg %p349
        $region78: #{tpu_custom_call.1} parent=75 // pred_check_branch
          %917 = sbr.rel (%p915) target = $region80
        $region79: #{tpu_custom_call.1} parent=75 // pred_region
          %s918 = smul.u32 2, %s27
          %s919 = ssub.s32 5, %s918
          %p920 = scmp.lt.s32.totalorder %s919, 2
          %s921 = scalar_select %p920, %s919, 2
          %s922 = smul.u32 8, %s921
          %p923 = scmp.ne.s32.totalorder 0, %s922
          %s924 = smul.addr %s918, 8
          %s925 = scalar_lea.vmem %s14, %s924
          // Predicated region
          $region81: #{tpu_custom_call.1} parent=79 // pred_check
            %p926 = pneg %p923
          $region82: #{tpu_custom_call.1} parent=79 // pred_check_branch
            %928 = sbr.rel (%p926) target = $region84
          $region83: #{tpu_custom_call.1} parent=79 // pred_region
            // Predicated region
            $region85: #{tpu_custom_call.1} parent=83 // pred_check
              _
            $region86: #{tpu_custom_call.1} parent=83 // pred_check_branch
              %930 = sbr.rel (0) target = $region88
            $region87: #{tpu_custom_call.1} parent=83 // pred_region
              // Predicated region
              $region107: #{tpu_custom_call.1} parent=87 // pred_check
                _
              $region108: #{tpu_custom_call.1} parent=87 // pred_check_branch
                %982 = sbr.rel (0) target = $region110
              $region109: #{tpu_custom_call.1} parent=87 // pred_region
                %s983 = sshrl.u32 %s921, 1
                // While loop
                $region111: #{tpu_custom_call.1} parent=109 // loop_pre_header
                  _
                $region112: #{tpu_custom_call.1} parent=109 // loop_header
                  %s985 = sphi 0, %s987
                  %p986 = scmp.ge.s32.totalorder %s985, %s983
                  %s990 = sphi 0, %s999
                  %s991 = sphi %s910, %s1002
                  %s992 = sphi %s925, %s1003
                $region113: #{tpu_custom_call.1} parent=109 // loop_header_branch
                  %989 = sbr.rel (%p986) target = $region117
                $region114: #{tpu_custom_call.1} parent=109 // loop_body
                  %v993 = vld [vmem:[%s991] sm:$0xff]
                  %994 = vst [vmem:[%s992] sm:$0xff] %v993
                  %v995 = vld [vmem:[%s991 + $0x8] sm:$0xff]
                  %996 = vst [vmem:[%s992 + $0x8] sm:$0xff] %v995
                  %s997 = sadd.s32 1, %s990
                  %p998 = scmp.ge.s32.totalorder %s997, %s983
                  %s999 = scalar_select %p998, 0, %s997
                  %s1000 = smul.u32 %s999, 16
                  %s1001 = smul.u32 %s999, 16
                  %s1002 = scalar_lea.vmem %s910, %s1000 [#allocation2]
                  %s1003 = scalar_lea.vmem %s925, %s1001
                $region115: #{tpu_custom_call.1} parent=109 // loop_footer
                  %s987 = sadd.s32 %s985, 1
                $region116: #{tpu_custom_call.1} parent=109 // loop_footer_branch
                  %984 = sbr.rel target = $region112
                $region117: #{tpu_custom_call.1} parent=109 // loop_exit
                  _
                %s1004 = sshrl.u32 %s921, 1
                %s1005 = sand.u32 %s921, 1
                %s1006 = smul.u32 %s1004, 2
                %s1007 = smul.u32 8, %s1006
                %s1008 = scalar_lea.vmem %s910, %s1007 [#allocation2]
                %s1009 = smul.u32 8, %s1006
                %s1010 = scalar_lea.vmem %s925, %s1009
                // While loop
                $region118: #{tpu_custom_call.1} parent=109 // loop_pre_header
                  _
                $region119: #{tpu_custom_call.1} parent=109 // loop_header
                  %s1012 = sphi 0, %s1014
                  %p1013 = scmp.ge.s32.totalorder %s1012, %s1005
                  %s1017 = sphi 0, %s1024
                  %s1018 = sphi %s1008, %s1027
                  %s1019 = sphi %s1010, %s1028
                $region120: #{tpu_custom_call.1} parent=109 // loop_header_branch
                  %1016 = sbr.rel (%p1013) target = $region124
                $region121: #{tpu_custom_call.1} parent=109 // loop_body
                  %v1020 = vld [vmem:[%s1018] sm:$0xff]
                  %1021 = vst [vmem:[%s1019] sm:$0xff] %v1020
                  %s1022 = sadd.s32 1, %s1017
                  %p1023 = scmp.ge.s32.totalorder %s1022, %s1005
                  %s1024 = scalar_select %p1023, 0, %s1022
                  %s1025 = smul.u32 %s1024, 8
                  %s1026 = smul.u32 %s1024, 8
                  %s1027 = scalar_lea.vmem %s1008, %s1025 [#allocation2]
                  %s1028 = scalar_lea.vmem %s1010, %s1026
                $region122: #{tpu_custom_call.1} parent=109 // loop_footer
                  %s1014 = sadd.s32 %s1012, 1
                $region123: #{tpu_custom_call.1} parent=109 // loop_footer_branch
                  %1011 = sbr.rel target = $region119
                $region124: #{tpu_custom_call.1} parent=109 // loop_exit
                  _
              $region110: #{tpu_custom_call.1} parent=87 // pred_fallthru
                _
              // Predicated region
              $region125: #{tpu_custom_call.1} parent=87 // pred_check
                _
              $region126: #{tpu_custom_call.1} parent=87 // pred_check_branch
                %1030 = sbr.rel target = $region128
              $region127: #{tpu_custom_call.1} parent=87 // pred_region
                _
              $region128: #{tpu_custom_call.1} parent=87 // pred_fallthru
                _
            $region88: #{tpu_custom_call.1} parent=83 // pred_fallthru
              _
            // Predicated region
            $region89: #{tpu_custom_call.1} parent=83 // pred_check
              _
            $region90: #{tpu_custom_call.1} parent=83 // pred_check_branch
              %932 = sbr.rel target = $region92
            $region91: #{tpu_custom_call.1} parent=83 // pred_region
              %s934 = ssub.s32 256, 1
              %s935 = sshrl.u32 %s921, 1
              // While loop
              $region93: #{tpu_custom_call.1} parent=91 // loop_pre_header
                _
              $region94: #{tpu_custom_call.1} parent=91 // loop_header
                %s937 = sphi 0, %s939
                %p938 = scmp.ge.s32.totalorder %s937, %s935
                %s942 = sphi 0, %s951
                %s943 = sphi %s910, %s954
                %s944 = sphi %s925, %s955
              $region95: #{tpu_custom_call.1} parent=91 // loop_header_branch
                %941 = sbr.rel (%p938) target = $region99
              $region96: #{tpu_custom_call.1} parent=91 // loop_body
                %v945 = vld [vmem:[%s943] sm:%s934]
                %946 = vst [vmem:[%s944] sm:%s934] %v945
                %v947 = vld [vmem:[%s943 + $0x8] sm:%s934]
                %948 = vst [vmem:[%s944 + $0x8] sm:%s934] %v947
                %s949 = sadd.s32 1, %s942
                %p950 = scmp.ge.s32.totalorder %s949, %s935
                %s951 = scalar_select %p950, 0, %s949
                %s952 = smul.u32 %s951, 16
                %s953 = smul.u32 %s951, 16
                %s954 = scalar_lea.vmem %s910, %s952 [#allocation2]
                %s955 = scalar_lea.vmem %s925, %s953
              $region97: #{tpu_custom_call.1} parent=91 // loop_footer
                %s939 = sadd.s32 %s937, 1
              $region98: #{tpu_custom_call.1} parent=91 // loop_footer_branch
                %936 = sbr.rel target = $region94
              $region99: #{tpu_custom_call.1} parent=91 // loop_exit
                _
              %s956 = sshrl.u32 %s921, 1
              %s957 = sand.u32 %s921, 1
              %s958 = smul.u32 %s956, 2
              %s959 = smul.u32 8, %s958
              %s960 = scalar_lea.vmem %s910, %s959 [#allocation2]
              %s961 = smul.u32 8, %s958
              %s962 = scalar_lea.vmem %s925, %s961
              // While loop
              $region100: #{tpu_custom_call.1} parent=91 // loop_pre_header
                _
              $region101: #{tpu_custom_call.1} parent=91 // loop_header
                %s964 = sphi 0, %s966
                %p965 = scmp.ge.s32.totalorder %s964, %s957
                %s969 = sphi 0, %s976
                %s970 = sphi %s960, %s979
                %s971 = sphi %s962, %s980
              $region102: #{tpu_custom_call.1} parent=91 // loop_header_branch
                %968 = sbr.rel (%p965) target = $region106
              $region103: #{tpu_custom_call.1} parent=91 // loop_body
                %v972 = vld [vmem:[%s970] sm:%s934]
                %973 = vst [vmem:[%s971] sm:%s934] %v972
                %s974 = sadd.s32 1, %s969
                %p975 = scmp.ge.s32.totalorder %s974, %s957
                %s976 = scalar_select %p975, 0, %s974
                %s977 = smul.u32 %s976, 8
                %s978 = smul.u32 %s976, 8
                %s979 = scalar_lea.vmem %s960, %s977 [#allocation2]
                %s980 = scalar_lea.vmem %s962, %s978
              $region104: #{tpu_custom_call.1} parent=91 // loop_footer
                %s966 = sadd.s32 %s964, 1
              $region105: #{tpu_custom_call.1} parent=91 // loop_footer_branch
                %963 = sbr.rel target = $region101
              $region106: #{tpu_custom_call.1} parent=91 // loop_exit
                _
            $region92: #{tpu_custom_call.1} parent=83 // pred_fallthru
              _
          $region84: #{tpu_custom_call.1} parent=79 // pred_fallthru
            _
          %1031 = vnop
        $region80: #{tpu_custom_call.1} parent=75 // pred_fallthru
          _
        // Predicated region
        $region129: #{tpu_custom_call.1} parent=75 // pred_check
          %p1032 = pneg %p375
        $region130: #{tpu_custom_call.1} parent=75 // pred_check_branch
          %1034 = sbr.rel (%p1032) target = $region132
        $region131: #{tpu_custom_call.1} parent=75 // pred_region
          %s1035 = smul.u32 2, %s27
          %s1036 = ssub.s32 5, %s1035
          %p1037 = scmp.lt.s32.totalorder %s1036, 2
          %s1038 = scalar_select %p1037, %s1036, 2
          %s1039 = smul.u32 8, %s1038
          %p1040 = scmp.ne.s32.totalorder 0, %s1039
          %s1041 = smul.addr %s1035, 8
          %s1042 = scalar_lea.vmem %s15, %s1041
          // Predicated region
          $region133: #{tpu_custom_call.1} parent=131 // pred_check
            %p1043 = pneg %p1040
          $region134: #{tpu_custom_call.1} parent=131 // pred_check_branch
            %1045 = sbr.rel (%p1043) target = $region136
          $region135: #{tpu_custom_call.1} parent=131 // pred_region
            // Predicated region
            $region137: #{tpu_custom_call.1} parent=135 // pred_check
              _
            $region138: #{tpu_custom_call.1} parent=135 // pred_check_branch
              %1047 = sbr.rel (0) target = $region140
            $region139: #{tpu_custom_call.1} parent=135 // pred_region
              // Predicated region
              $region159: #{tpu_custom_call.1} parent=139 // pred_check
                _
              $region160: #{tpu_custom_call.1} parent=139 // pred_check_branch
                %1099 = sbr.rel (0) target = $region162
              $region161: #{tpu_custom_call.1} parent=139 // pred_region
                %s1100 = sshrl.u32 %s1038, 1
                // While loop
                $region163: #{tpu_custom_call.1} parent=161 // loop_pre_header
                  _
                $region164: #{tpu_custom_call.1} parent=161 // loop_header
                  %s1102 = sphi 0, %s1104
                  %p1103 = scmp.ge.s32.totalorder %s1102, %s1100
                  %s1107 = sphi 0, %s1116
                  %s1108 = sphi %s914, %s1119
                  %s1109 = sphi %s1042, %s1120
                $region165: #{tpu_custom_call.1} parent=161 // loop_header_branch
                  %1106 = sbr.rel (%p1103) target = $region169
                $region166: #{tpu_custom_call.1} parent=161 // loop_body
                  %v1110 = vld [vmem:[%s1108] sm:$0xff]
                  %1111 = vst [vmem:[%s1109] sm:$0xff] %v1110
                  %v1112 = vld [vmem:[%s1108 + $0x8] sm:$0xff]
                  %1113 = vst [vmem:[%s1109 + $0x8] sm:$0xff] %v1112
                  %s1114 = sadd.s32 1, %s1107
                  %p1115 = scmp.ge.s32.totalorder %s1114, %s1100
                  %s1116 = scalar_select %p1115, 0, %s1114
                  %s1117 = smul.u32 %s1116, 16
                  %s1118 = smul.u32 %s1116, 16
                  %s1119 = scalar_lea.vmem %s914, %s1117 [#allocation3]
                  %s1120 = scalar_lea.vmem %s1042, %s1118
                $region167: #{tpu_custom_call.1} parent=161 // loop_footer
                  %s1104 = sadd.s32 %s1102, 1
                $region168: #{tpu_custom_call.1} parent=161 // loop_footer_branch
                  %1101 = sbr.rel target = $region164
                $region169: #{tpu_custom_call.1} parent=161 // loop_exit
                  _
                %s1121 = sshrl.u32 %s1038, 1
                %s1122 = sand.u32 %s1038, 1
                %s1123 = smul.u32 %s1121, 2
                %s1124 = smul.u32 8, %s1123
                %s1125 = scalar_lea.vmem %s914, %s1124 [#allocation3]
                %s1126 = smul.u32 8, %s1123
                %s1127 = scalar_lea.vmem %s1042, %s1126
                // While loop
                $region170: #{tpu_custom_call.1} parent=161 // loop_pre_header
                  _
                $region171: #{tpu_custom_call.1} parent=161 // loop_header
                  %s1129 = sphi 0, %s1131
                  %p1130 = scmp.ge.s32.totalorder %s1129, %s1122
                  %s1134 = sphi 0, %s1141
                  %s1135 = sphi %s1125, %s1144
                  %s1136 = sphi %s1127, %s1145
                $region172: #{tpu_custom_call.1} parent=161 // loop_header_branch
                  %1133 = sbr.rel (%p1130) target = $region176
                $region173: #{tpu_custom_call.1} parent=161 // loop_body
                  %v1137 = vld [vmem:[%s1135] sm:$0xff]
                  %1138 = vst [vmem:[%s1136] sm:$0xff] %v1137
                  %s1139 = sadd.s32 1, %s1134
                  %p1140 = scmp.ge.s32.totalorder %s1139, %s1122
                  %s1141 = scalar_select %p1140, 0, %s1139
                  %s1142 = smul.u32 %s1141, 8
                  %s1143 = smul.u32 %s1141, 8
                  %s1144 = scalar_lea.vmem %s1125, %s1142 [#allocation3]
                  %s1145 = scalar_lea.vmem %s1127, %s1143
                $region174: #{tpu_custom_call.1} parent=161 // loop_footer
                  %s1131 = sadd.s32 %s1129, 1
                $region175: #{tpu_custom_call.1} parent=161 // loop_footer_branch
                  %1128 = sbr.rel target = $region171
                $region176: #{tpu_custom_call.1} parent=161 // loop_exit
                  _
              $region162: #{tpu_custom_call.1} parent=139 // pred_fallthru
                _
              // Predicated region
              $region177: #{tpu_custom_call.1} parent=139 // pred_check
                _
              $region178: #{tpu_custom_call.1} parent=139 // pred_check_branch
                %1147 = sbr.rel target = $region180
              $region179: #{tpu_custom_call.1} parent=139 // pred_region
                _
              $region180: #{tpu_custom_call.1} parent=139 // pred_fallthru
                _
            $region140: #{tpu_custom_call.1} parent=135 // pred_fallthru
              _
            // Predicated region
            $region141: #{tpu_custom_call.1} parent=135 // pred_check
              _
            $region142: #{tpu_custom_call.1} parent=135 // pred_check_branch
              %1049 = sbr.rel target = $region144
            $region143: #{tpu_custom_call.1} parent=135 // pred_region
              %s1051 = ssub.s32 256, 1
              %s1052 = sshrl.u32 %s1038, 1
              // While loop
              $region145: #{tpu_custom_call.1} parent=143 // loop_pre_header
                _
              $region146: #{tpu_custom_call.1} parent=143 // loop_header
                %s1054 = sphi 0, %s1056
                %p1055 = scmp.ge.s32.totalorder %s1054, %s1052
                %s1059 = sphi 0, %s1068
                %s1060 = sphi %s914, %s1071
                %s1061 = sphi %s1042, %s1072
              $region147: #{tpu_custom_call.1} parent=143 // loop_header_branch
                %1058 = sbr.rel (%p1055) target = $region151
              $region148: #{tpu_custom_call.1} parent=143 // loop_body
                %v1062 = vld [vmem:[%s1060] sm:%s1051]
                %1063 = vst [vmem:[%s1061] sm:%s1051] %v1062
                %v1064 = vld [vmem:[%s1060 + $0x8] sm:%s1051]
                %1065 = vst [vmem:[%s1061 + $0x8] sm:%s1051] %v1064
                %s1066 = sadd.s32 1, %s1059
                %p1067 = scmp.ge.s32.totalorder %s1066, %s1052
                %s1068 = scalar_select %p1067, 0, %s1066
                %s1069 = smul.u32 %s1068, 16
                %s1070 = smul.u32 %s1068, 16
                %s1071 = scalar_lea.vmem %s914, %s1069 [#allocation3]
                %s1072 = scalar_lea.vmem %s1042, %s1070
              $region149: #{tpu_custom_call.1} parent=143 // loop_footer
                %s1056 = sadd.s32 %s1054, 1
              $region150: #{tpu_custom_call.1} parent=143 // loop_footer_branch
                %1053 = sbr.rel target = $region146
              $region151: #{tpu_custom_call.1} parent=143 // loop_exit
                _
              %s1073 = sshrl.u32 %s1038, 1
              %s1074 = sand.u32 %s1038, 1
              %s1075 = smul.u32 %s1073, 2
              %s1076 = smul.u32 8, %s1075
              %s1077 = scalar_lea.vmem %s914, %s1076 [#allocation3]
              %s1078 = smul.u32 8, %s1075
              %s1079 = scalar_lea.vmem %s1042, %s1078
              // While loop
              $region152: #{tpu_custom_call.1} parent=143 // loop_pre_header
                _
              $region153: #{tpu_custom_call.1} parent=143 // loop_header
                %s1081 = sphi 0, %s1083
                %p1082 = scmp.ge.s32.totalorder %s1081, %s1074
                %s1086 = sphi 0, %s1093
                %s1087 = sphi %s1077, %s1096
                %s1088 = sphi %s1079, %s1097
              $region154: #{tpu_custom_call.1} parent=143 // loop_header_branch
                %1085 = sbr.rel (%p1082) target = $region158
              $region155: #{tpu_custom_call.1} parent=143 // loop_body
                %v1089 = vld [vmem:[%s1087] sm:%s1051]
                %1090 = vst [vmem:[%s1088] sm:%s1051] %v1089
                %s1091 = sadd.s32 1, %s1086
                %p1092 = scmp.ge.s32.totalorder %s1091, %s1074
                %s1093 = scalar_select %p1092, 0, %s1091
                %s1094 = smul.u32 %s1093, 8
                %s1095 = smul.u32 %s1093, 8
                %s1096 = scalar_lea.vmem %s1077, %s1094 [#allocation3]
                %s1097 = scalar_lea.vmem %s1079, %s1095
              $region156: #{tpu_custom_call.1} parent=143 // loop_footer
                %s1083 = sadd.s32 %s1081, 1
              $region157: #{tpu_custom_call.1} parent=143 // loop_footer_branch
                %1080 = sbr.rel target = $region153
              $region158: #{tpu_custom_call.1} parent=143 // loop_exit
                _
            $region144: #{tpu_custom_call.1} parent=135 // pred_fallthru
              _
          $region136: #{tpu_custom_call.1} parent=131 // pred_fallthru
            _
          %1148 = vnop
        $region132: #{tpu_custom_call.1} parent=75 // pred_fallthru
          _
      $region76: #{tpu_custom_call.1} parent=5 // pred_fallthru
        _
      %p1149 = scmp.le.s32.totalorder 2, %s22
      // Predicated region
      $region181: #{tpu_custom_call.1} parent=5 // pred_check
        %p1150 = pneg %p1149
      $region182: #{tpu_custom_call.1} parent=5 // pred_check_branch
        %1152 = sbr.rel (%p1150) target = $region184
      $region183: #{tpu_custom_call.1} parent=5 // pred_region
        %s1153 = ssub.s32 %s22, 2
        // Predicated region
        $region185: #{tpu_custom_call.1} parent=183 // pred_check
          %p1154 = pneg %p355
        $region186: #{tpu_custom_call.1} parent=183 // pred_check_branch
          %1156 = sbr.rel (%p1154) target = $region188
        $region187: #{tpu_custom_call.1} parent=183 // pred_region
          %s1157 = sand.u32 %s340, 1
          %s1158 = sand.u32 %s340, 1
          %s1159 = smul.addr %s1158, 16
          %s1160 = scalar_lea.vmem [#allocation2], %s1159
        $region188: #{tpu_custom_call.1} parent=183 // pred_fallthru
          _
        // Predicated region
        $region189: #{tpu_custom_call.1} parent=183 // pred_check
          %p1161 = pneg %p381
        $region190: #{tpu_custom_call.1} parent=183 // pred_check_branch
          %1163 = sbr.rel (%p1161) target = $region192
        $region191: #{tpu_custom_call.1} parent=183 // pred_region
          %s1164 = sand.u32 %s366, 1
          %s1165 = sand.u32 %s366, 1
          %s1166 = smul.addr %s1165, 16
          %s1167 = scalar_lea.vmem [#allocation3], %s1166
        $region192: #{tpu_custom_call.1} parent=183 // pred_fallthru
          _
      $region184: #{tpu_custom_call.1} parent=5 // pred_fallthru
        _
    $region6: #{tpu_custom_call.1} parent=1 // loop_footer
      %s26 = sadd.s32 1, %s22
    $region7: #{tpu_custom_call.1} parent=1 // loop_footer_branch
      %21 = sbr.rel target = $region3
    $region8: #{tpu_custom_call.1} parent=1 // loop_exit
      _

</llo_original>
